<compile_context>
chip_gen: v7x
topology: tpu7x:2x2x1
jax: 0.10.0
libtpu: 0.0.40
codegen_flags: <defaults>
</compile_context>

<pallas_src>
import math
import numpy as np

import jax
import jax.numpy as jnp
from jax.experimental import pallas as pl
from jax.experimental.pallas import tpu as pltpu

WIDTH = 32  # module default
_CX = 1e-4
_CY = 1e-4


def _round_up(x, m):
    return ((x + m - 1) // m) * m


def _iphi_kernel(x_ref,                                   # (2, tn)
                 f_ref,                                   # (32, 4) freq matrix
                 w0_ref, b0_ref,                          # (32, 4), (32, 1)
                 wnc0_ref, wncs_ref, wncc_ref, bnc_ref,   # (128, 32) x3, (128, 1)
                 w1_ref, b1_ref,                          # (128, 128), (128, 1)
                 w2_ref, b2_ref,
                 w3_ref, b3_ref,
                 w4_ref, b4_ref,                          # (2, 128), (2, 1)
                 o_ref):                                  # (2, tn)
    x = x_ref[...]                                        # (2, tn) f32
    x0 = x[0:1, :]                                        # (1, tn)
    x1 = x[1:2, :]
    dx = x0 - _CX
    dy = x1 - _CY

    # angle = atan2(y - cy, x - cx); radius = ||x - center||_2
    angle = jnp.arctan2(dy, dx)                           # (1, tn)
    radius = jnp.sqrt(dx * dx + dy * dy)                  # (1, tn)

    # 4-row feature slab (sublane concat of single rows — cheap).
    xd4 = jnp.concatenate([x0, x1, angle, radius], axis=0)   # (4, tn)

    # Positional features: args[d*8+f, :] = pi * 2**f * xd4[d, :]
    # (F is a sparse (32, 4) selection matrix built at trace time and passed
    #  in as an input — no captured constants.)
    args = jnp.dot(f_ref[...], xd4, preferred_element_type=jnp.float32)   # (32, tn)
    x_sin = jnp.sin(args)
    x_cos = jnp.cos(args)

    # fc0: 4 -> 32
    h0 = jnp.dot(w0_ref[...], xd4,
                 preferred_element_type=jnp.float32) + b0_ref[...]        # (32, tn)

    # fc_no_code: 96 -> 128, K dimension split so no lane-axis concat.
    h = (jnp.dot(wnc0_ref[...], h0, preferred_element_type=jnp.float32)
         + jnp.dot(wncs_ref[...], x_sin, preferred_element_type=jnp.float32)
         + jnp.dot(wncc_ref[...], x_cos, preferred_element_type=jnp.float32)
         + bnc_ref[...])                                                  # (128, tn)

    # fc1/fc2/fc3 -> tanh (no activation between fc_no_code and fc1).
    h = jnp.tanh(jnp.dot(w1_ref[...], h,
                         preferred_element_type=jnp.float32) + b1_ref[...])
    h = jnp.tanh(jnp.dot(w2_ref[...], h,
                         preferred_element_type=jnp.float32) + b2_ref[...])
    h = jnp.tanh(jnp.dot(w3_ref[...], h,
                         preferred_element_type=jnp.float32) + b3_ref[...])

    # fc4: 128 -> 2
    xd_out = jnp.dot(w4_ref[...], h,
                     preferred_element_type=jnp.float32) + b4_ref[...]    # (2, tn)

    # return x + x * xd
    o_ref[...] = x + x * xd_out


def init_params(key, width=WIDTH):
    """Deterministic Linear params.  Weights stored as (in, out); bias as (1, out)."""
    def lin(k, fin, fout):
        kw, kb = jax.random.split(k)
        bound = 1.0 / math.sqrt(fin)
        w = jax.random.uniform(kw, (fin, fout), jnp.float32, -bound, bound)
        b = jax.random.uniform(kb, (1, fout), jnp.float32, -bound, bound)
        return w, b

    keys = jax.random.split(key, 6)
    w0, b0 = lin(keys[0], 4, width)                 # fc0
    wnc, bnc = lin(keys[1], 3 * width, 4 * width)   # fc_no_code
    w1, b1 = lin(keys[2], 4 * width, 4 * width)     # fc1
    w2, b2 = lin(keys[3], 4 * width, 4 * width)     # fc2
    w3, b3 = lin(keys[4], 4 * width, 4 * width)     # fc3
    w4, b4 = lin(keys[5], 4 * width, 2)             # fc4
    return (w0, b0, wnc, bnc, w1, b1, w2, b2, w3, b3, w4, b4)


def iphi_forward(x, params, tn=1024):
    (w0, b0, wnc, bnc, w1, b1, w2, b2, w3, b3, w4, b4) = params
    width = w0.shape[1]
    hid = 4 * width
    b, n, _ = x.shape
    rows = b * n

    # Tile sizing: lane-aligned (multiple of 128), clamped so tiny inputs
    # don't force a huge padded tile; large inputs get tn=1024 (well inside
    # the v7x 32 MiB scoped-VMEM budget: ~2.4 KB of live activations/point
    # plus ~0.25 MB of resident weights).
    tn = max(128, min(int(tn), _round_up(rows, 128)))
    tn = _round_up(tn, 128)
    padded = _round_up(rows, tn)

    x2 = x.reshape(rows, 2).astype(jnp.float32)
    if padded != rows:
        x2 = jnp.pad(x2, ((0, padded - rows), (0, 0)))
    xt = x2.T                                           # (2, padded), lane-dense

    # Frequency selection matrix: F[d*(width//4)+f, d] = pi * 2**f
    nf = width // 4
    fmat = np.zeros((4 * nf, 4), dtype=np.float32)
    freqs = (np.pi * (2.0 ** np.arange(nf))).astype(np.float32)
    for d in range(4):
        fmat[d * nf:(d + 1) * nf, d] = freqs
    fmat = jnp.asarray(fmat)

    # Pre-transpose all weights (out, in); biases as (out, 1) columns.
    wncT = wnc.T
    consts = [
        fmat,
        w0.T, b0.T,
        wncT[:, 0:width], wncT[:, width:2 * width], wncT[:, 2 * width:3 * width], bnc.T,
        w1.T, b1.T,
        w2.T, b2.T,
        w3.T, b3.T,
        w4.T, b4.T,
    ]

    row_spec = pl.BlockSpec((2, tn), lambda i: (0, i))
    const_specs = [pl.BlockSpec(c.shape, lambda i: (0, 0)) for c in consts]

    # Advisory cost hint for XLA's scheduler.
    flops = 2 * padded * (2 * width * 4 + 3 * width * hid + 3 * hid * hid + 2 * hid)
    transcendentals = padded * (2 * width + 3 * hid + 2)
    param_bytes = int(sum(int(np.prod(c.shape)) for c in consts)) * 4
    bytes_accessed = padded * 2 * 4 * 2 + param_bytes

    out_t = pl.pallas_call(
        _iphi_kernel,
        out_shape=jax.ShapeDtypeStruct((2, padded), jnp.float32),
        grid_spec=pltpu.PrefetchScalarGridSpec(
            num_scalar_prefetch=0,
            grid=(padded // tn,),
            in_specs=[row_spec] + const_specs,
            out_specs=pl.BlockSpec((2, tn), lambda i: (0, i)),
        ),
        compiler_params=pltpu.CompilerParams(
            dimension_semantics=("parallel",),
            vmem_limit_bytes=32 * 1024 * 1024),
        cost_estimate=pl.CostEstimate(
            flops=flops,
            transcendentals=transcendentals,
            bytes_accessed=bytes_accessed),
    )(xt, *consts)

    return out_t[:, :rows].T.reshape(b, n, 2)


def iphi_reference(x, params, width=WIDTH):
    """Pure-JAX reference mirroring the PyTorch forward (code=None path)."""
    (w0, b0, wnc, bnc, w1, b1, w2, b2, w3, b3, w4, b4) = params
    cx = cy = jnp.float32(1e-4)
    angle = jnp.arctan2(x[:, :, 1] - cy, x[:, :, 0] - cx)
    radius = jnp.sqrt(jnp.sum((x - jnp.array([cx, cy])[None, None, :]) ** 2, -1))
    xd = jnp.stack([x[:, :, 0], x[:, :, 1], angle, radius], axis=-1)  # (b,n,4)
    b_, n_, d_ = xd.shape
    B = np.pi * (2.0 ** np.arange(width // 4)).astype(np.float32)
    arg = xd[..., None] * B[None, None, None, :]
    x_sin = jnp.sin(arg).reshape(b_, n_, d_ * width // 4)
    x_cos = jnp.cos(arg).reshape(b_, n_, d_ * width // 4)
    h0 = xd @ w0 + b0
    h = jnp.concatenate([h0, x_sin, x_cos], axis=-1)
    h = h @ wnc + bnc
    h = jnp.tanh(h @ w1 + b1)
    h = jnp.tanh(h @ w2 + b2)
    h = jnp.tanh(h @ w3 + b3)
    xd_out = h @ w4 + b4
    return x + x * xd_out


if __name__ == "__main__":
    key = jax.random.PRNGKey(0)
    kx, kp = jax.random.split(key)

    B, N = 2, 64
    x = jax.random.uniform(kx, (B, N, 2), jnp.float32, -1.0, 1.0)
    params = init_params(kp)

    out = iphi_forward(x, params)
    out = jax.block_until_ready(out)

    ref = iphi_reference(x, params)
    np.testing.assert_allclose(np.asarray(out), np.asarray(ref),
                               rtol=1e-5, atol=1e-5)
    assert out.shape == (B, N, 2)
    print("KERNEL_OK")
</pallas_src>

<mosaic_0001>
module attributes {stable_mosaic.version = 11 : i64} {
  func.func @_iphi_kernel(%arg0: i32, %arg1: memref<2x128xf32, #tpu.memory_space<vmem>>, %arg2: memref<32x4xf32, #tpu.memory_space<vmem>>, %arg3: memref<32x4xf32, #tpu.memory_space<vmem>>, %arg4: memref<32x1xf32, #tpu.memory_space<vmem>>, %arg5: memref<128x32xf32, #tpu.memory_space<vmem>>, %arg6: memref<128x32xf32, #tpu.memory_space<vmem>>, %arg7: memref<128x32xf32, #tpu.memory_space<vmem>>, %arg8: memref<128x1xf32, #tpu.memory_space<vmem>>, %arg9: memref<128x128xf32, #tpu.memory_space<vmem>>, %arg10: memref<128x1xf32, #tpu.memory_space<vmem>>, %arg11: memref<128x128xf32, #tpu.memory_space<vmem>>, %arg12: memref<128x1xf32, #tpu.memory_space<vmem>>, %arg13: memref<128x128xf32, #tpu.memory_space<vmem>>, %arg14: memref<128x1xf32, #tpu.memory_space<vmem>>, %arg15: memref<2x128xf32, #tpu.memory_space<vmem>>, %arg16: memref<2x1xf32, #tpu.memory_space<vmem>>, %arg17: memref<2x128xf32, #tpu.memory_space<vmem>>) attributes {dimension_semantics = [#tpu.dimension_semantics<parallel>], iteration_bounds = array<i64: 1>, scalar_prefetch = 0 : i64, scratch_operands = 0 : i64, tpu.core_type = #tpu.core_type<tc>, window_params = [{transform_indices = @transform_0, window_bounds = array<i64: 2, 128>}, {pipeline_mode = #tpu.pipeline_mode<synchronous>, transform_indices = @transform_1, window_bounds = array<i64: 32, 4>}, {pipeline_mode = #tpu.pipeline_mode<synchronous>, transform_indices = @transform_2, window_bounds = array<i64: 32, 4>}, {pipeline_mode = #tpu.pipeline_mode<synchronous>, transform_indices = @transform_3, window_bounds = array<i64: 32, 1>}, {pipeline_mode = #tpu.pipeline_mode<synchronous>, transform_indices = @transform_4, window_bounds = array<i64: 128, 32>}, {pipeline_mode = #tpu.pipeline_mode<synchronous>, transform_indices = @transform_5, window_bounds = array<i64: 128, 32>}, {pipeline_mode = #tpu.pipeline_mode<synchronous>, transform_indices = @transform_6, window_bounds = array<i64: 128, 32>}, {pipeline_mode = #tpu.pipeline_mode<synchronous>, transform_indices = @transform_7, window_bounds = array<i64: 128, 1>}, {pipeline_mode = #tpu.pipeline_mode<synchronous>, transform_indices = @transform_8, window_bounds = array<i64: 128, 128>}, {pipeline_mode = #tpu.pipeline_mode<synchronous>, transform_indices = @transform_9, window_bounds = array<i64: 128, 1>}, {pipeline_mode = #tpu.pipeline_mode<synchronous>, transform_indices = @transform_10, window_bounds = array<i64: 128, 128>}, {pipeline_mode = #tpu.pipeline_mode<synchronous>, transform_indices = @transform_11, window_bounds = array<i64: 128, 1>}, {pipeline_mode = #tpu.pipeline_mode<synchronous>, transform_indices = @transform_12, window_bounds = array<i64: 128, 128>}, {pipeline_mode = #tpu.pipeline_mode<synchronous>, transform_indices = @transform_13, window_bounds = array<i64: 128, 1>}, {pipeline_mode = #tpu.pipeline_mode<synchronous>, transform_indices = @transform_14, window_bounds = array<i64: 2, 128>}, {pipeline_mode = #tpu.pipeline_mode<synchronous>, transform_indices = @transform_15, window_bounds = array<i64: 2, 1>}, {transform_indices = @transform_16, window_bounds = array<i64: 2, 128>}]} {
    %c0 = arith.constant 0 : index
    %c0_0 = arith.constant 0 : index
    %0 = vector.load %arg1[%c0, %c0_0] : memref<2x128xf32, #tpu.memory_space<vmem>>, vector<2x128xf32>
    %1 = vector.extract_strided_slice %0 {offsets = [0, 0], sizes = [1, 128], strides = [1, 1]} : vector<2x128xf32> to vector<1x128xf32>
    %2 = vector.extract_strided_slice %0 {offsets = [1, 0], sizes = [1, 128], strides = [1, 1]} : vector<2x128xf32> to vector<1x128xf32>
    %cst = arith.constant 9.99999974E-5 : f32
    %3 = vector.broadcast %cst : f32 to vector<1x128xf32>
    %4 = arith.subf %1, %3 : vector<1x128xf32>
    %cst_1 = arith.constant 9.99999974E-5 : f32
    %5 = vector.broadcast %cst_1 : f32 to vector<1x128xf32>
    %6 = arith.subf %2, %5 : vector<1x128xf32>
    %7 = math.atan2 %6, %4 : vector<1x128xf32>
    %8 = arith.mulf %4, %4 : vector<1x128xf32>
    %9 = arith.mulf %6, %6 : vector<1x128xf32>
    %10 = arith.addf %8, %9 : vector<1x128xf32>
    %11 = math.sqrt %10 : vector<1x128xf32>
    %12 = tpu.concatenate %1, %2, %7, %11 in 0 : vector<1x128xf32>, vector<1x128xf32>, vector<1x128xf32>, vector<1x128xf32> -> vector<4x128xf32>
    %c0_2 = arith.constant 0 : index
    %c0_3 = arith.constant 0 : index
    %13 = vector.load %arg2[%c0_2, %c0_3] : memref<32x4xf32, #tpu.memory_space<vmem>>, vector<32x4xf32>
    %cst_4 = arith.constant dense<0.000000e+00> : vector<32x128xf32>
    %14 = tpu.matmul %13, %12, %cst_4 {dimension_numbers = #tpu.dot_dimension_numbers<[1], [0], [0], [1], [0, 0, 1, 1], [], []>} : vector<32x4xf32>, vector<4x128xf32>, vector<32x128xf32> -> vector<32x128xf32>
    %15 = math.sin %14 : vector<32x128xf32>
    %16 = math.cos %14 : vector<32x128xf32>
    %c0_5 = arith.constant 0 : index
    %c0_6 = arith.constant 0 : index
    %17 = vector.load %arg3[%c0_5, %c0_6] : memref<32x4xf32, #tpu.memory_space<vmem>>, vector<32x4xf32>
    %cst_7 = arith.constant dense<0.000000e+00> : vector<32x128xf32>
    %18 = tpu.matmul %17, %12, %cst_7 {dimension_numbers = #tpu.dot_dimension_numbers<[1], [0], [0], [1], [0, 0, 1, 1], [], []>} : vector<32x4xf32>, vector<4x128xf32>, vector<32x128xf32> -> vector<32x128xf32>
    %c0_8 = arith.constant 0 : index
    %c0_9 = arith.constant 0 : index
    %19 = vector.load %arg4[%c0_8, %c0_9] : memref<32x1xf32, #tpu.memory_space<vmem>>, vector<32x1xf32>
    %20 = vector.broadcast %19 : vector<32x1xf32> to vector<32x128xf32>
    %21 = arith.addf %18, %20 : vector<32x128xf32>
    %c0_10 = arith.constant 0 : index
    %c0_11 = arith.constant 0 : index
    %22 = vector.load %arg5[%c0_10, %c0_11] : memref<128x32xf32, #tpu.memory_space<vmem>>, vector<128x32xf32>
    %cst_12 = arith.constant dense<0.000000e+00> : vector<128x128xf32>
    %23 = tpu.matmul %22, %21, %cst_12 {dimension_numbers = #tpu.dot_dimension_numbers<[1], [0], [0], [1], [0, 0, 1, 1], [], []>} : vector<128x32xf32>, vector<32x128xf32>, vector<128x128xf32> -> vector<128x128xf32>
    %c0_13 = arith.constant 0 : index
    %c0_14 = arith.constant 0 : index
    %24 = vector.load %arg6[%c0_13, %c0_14] : memref<128x32xf32, #tpu.memory_space<vmem>>, vector<128x32xf32>
    %cst_15 = arith.constant dense<0.000000e+00> : vector<128x128xf32>
    %25 = tpu.matmul %24, %15, %cst_15 {dimension_numbers = #tpu.dot_dimension_numbers<[1], [0], [0], [1], [0, 0, 1, 1], [], []>} : vector<128x32xf32>, vector<32x128xf32>, vector<128x128xf32> -> vector<128x128xf32>
    %26 = arith.addf %23, %25 : vector<128x128xf32>
    %c0_16 = arith.constant 0 : index
    %c0_17 = arith.constant 0 : index
    %27 = vector.load %arg7[%c0_16, %c0_17] : memref<128x32xf32, #tpu.memory_space<vmem>>, vector<128x32xf32>
    %cst_18 = arith.constant dense<0.000000e+00> : vector<128x128xf32>
    %28 = tpu.matmul %27, %16, %cst_18 {dimension_numbers = #tpu.dot_dimension_numbers<[1], [0], [0], [1], [0, 0, 1, 1], [], []>} : vector<128x32xf32>, vector<32x128xf32>, vector<128x128xf32> -> vector<128x128xf32>
    %29 = arith.addf %26, %28 : vector<128x128xf32>
    %c0_19 = arith.constant 0 : index
    %c0_20 = arith.constant 0 : index
    %30 = vector.load %arg8[%c0_19, %c0_20] : memref<128x1xf32, #tpu.memory_space<vmem>>, vector<128x1xf32>
    %31 = vector.broadcast %30 : vector<128x1xf32> to vector<128x128xf32>
    %32 = arith.addf %29, %31 : vector<128x128xf32>
    %c0_21 = arith.constant 0 : index
    %c0_22 = arith.constant 0 : index
    %33 = vector.load %arg9[%c0_21, %c0_22] : memref<128x128xf32, #tpu.memory_space<vmem>>, vector<128x128xf32>
    %cst_23 = arith.constant dense<0.000000e+00> : vector<128x128xf32>
    %34 = tpu.matmul %33, %32, %cst_23 {dimension_numbers = #tpu.dot_dimension_numbers<[1], [0], [0], [1], [0, 0, 1, 1], [], []>} : vector<128x128xf32>, vector<128x128xf32>, vector<128x128xf32> -> vector<128x128xf32>
    %c0_24 = arith.constant 0 : index
    %c0_25 = arith.constant 0 : index
    %35 = vector.load %arg10[%c0_24, %c0_25] : memref<128x1xf32, #tpu.memory_space<vmem>>, vector<128x1xf32>
    %36 = vector.broadcast %35 : vector<128x1xf32> to vector<128x128xf32>
    %37 = arith.addf %34, %36 : vector<128x128xf32>
    %38 = math.tanh %37 : vector<128x128xf32>
    %c0_26 = arith.constant 0 : index
    %c0_27 = arith.constant 0 : index
    %39 = vector.load %arg11[%c0_26, %c0_27] : memref<128x128xf32, #tpu.memory_space<vmem>>, vector<128x128xf32>
    %cst_28 = arith.constant dense<0.000000e+00> : vector<128x128xf32>
    %40 = tpu.matmul %39, %38, %cst_28 {dimension_numbers = #tpu.dot_dimension_numbers<[1], [0], [0], [1], [0, 0, 1, 1], [], []>} : vector<128x128xf32>, vector<128x128xf32>, vector<128x128xf32> -> vector<128x128xf32>
    %c0_29 = arith.constant 0 : index
    %c0_30 = arith.constant 0 : index
    %41 = vector.load %arg12[%c0_29, %c0_30] : memref<128x1xf32, #tpu.memory_space<vmem>>, vector<128x1xf32>
    %42 = vector.broadcast %41 : vector<128x1xf32> to vector<128x128xf32>
    %43 = arith.addf %40, %42 : vector<128x128xf32>
    %44 = math.tanh %43 : vector<128x128xf32>
    %c0_31 = arith.constant 0 : index
    %c0_32 = arith.constant 0 : index
    %45 = vector.load %arg13[%c0_31, %c0_32] : memref<128x128xf32, #tpu.memory_space<vmem>>, vector<128x128xf32>
    %cst_33 = arith.constant dense<0.000000e+00> : vector<128x128xf32>
    %46 = tpu.matmul %45, %44, %cst_33 {dimension_numbers = #tpu.dot_dimension_numbers<[1], [0], [0], [1], [0, 0, 1, 1], [], []>} : vector<128x128xf32>, vector<128x128xf32>, vector<128x128xf32> -> vector<128x128xf32>
    %c0_34 = arith.constant 0 : index
    %c0_35 = arith.constant 0 : index
    %47 = vector.load %arg14[%c0_34, %c0_35] : memref<128x1xf32, #tpu.memory_space<vmem>>, vector<128x1xf32>
    %48 = vector.broadcast %47 : vector<128x1xf32> to vector<128x128xf32>
    %49 = arith.addf %46, %48 : vector<128x128xf32>
    %50 = math.tanh %49 : vector<128x128xf32>
    %c0_36 = arith.constant 0 : index
    %c0_37 = arith.constant 0 : index
    %51 = vector.load %arg15[%c0_36, %c0_37] : memref<2x128xf32, #tpu.memory_space<vmem>>, vector<2x128xf32>
    %cst_38 = arith.constant dense<0.000000e+00> : vector<2x128xf32>
    %52 = tpu.matmul %51, %50, %cst_38 {dimension_numbers = #tpu.dot_dimension_numbers<[1], [0], [0], [1], [0, 0, 1, 1], [], []>} : vector<2x128xf32>, vector<128x128xf32>, vector<2x128xf32> -> vector<2x128xf32>
    %c0_39 = arith.constant 0 : index
    %c0_40 = arith.constant 0 : index
    %53 = vector.load %arg16[%c0_39, %c0_40] : memref<2x1xf32, #tpu.memory_space<vmem>>, vector<2x1xf32>
    %54 = vector.broadcast %53 : vector<2x1xf32> to vector<2x128xf32>
    %55 = arith.addf %52, %54 : vector<2x128xf32>
    %56 = arith.mulf %0, %55 : vector<2x128xf32>
    %57 = arith.addf %0, %56 : vector<2x128xf32>
    %c0_41 = arith.constant 0 : index
    %c0_42 = arith.constant 0 : index
    %58 = vector.load %arg17[%c0_41, %c0_42] : memref<2x128xf32, #tpu.memory_space<vmem>>, vector<2x128xf32>
    tpu.vector_store %arg17[%c0_41, %c0_42], %57 {strides = array<i32>} : memref<2x128xf32, #tpu.memory_space<vmem>>, vector<2x128xf32>,
    return
  }
  func.func @transform_0(%arg0: i32) -> (i32, i32) {
    %c0_i32 = arith.constant 0 : i32
    %c0_i32_0 = arith.constant 0 : i32
    return %c0_i32, %arg0 : i32, i32
  }
  func.func @transform_1(%arg0: i32) -> (i32, i32) {
    %c0_i32 = arith.constant 0 : i32
    %c0_i32_0 = arith.constant 0 : i32
    %c0_i32_1 = arith.constant 0 : i32
    return %c0_i32, %c0_i32_0 : i32, i32
  }
  func.func @transform_2(%arg0: i32) -> (i32, i32) {
    %c0_i32 = arith.constant 0 : i32
    %c0_i32_0 = arith.constant 0 : i32
    %c0_i32_1 = arith.constant 0 : i32
    return %c0_i32, %c0_i32_0 : i32, i32
  }
  func.func @transform_3(%arg0: i32) -> (i32, i32) {
    %c0_i32 = arith.constant 0 : i32
    %c0_i32_0 = arith.constant 0 : i32
    %c0_i32_1 = arith.constant 0 : i32
    return %c0_i32, %c0_i32_0 : i32, i32
  }
  func.func @transform_4(%arg0: i32) -> (i32, i32) {
    %c0_i32 = arith.constant 0 : i32
    %c0_i32_0 = arith.constant 0 : i32
    %c0_i32_1 = arith.constant 0 : i32
    return %c0_i32, %c0_i32_0 : i32, i32
  }
  func.func @transform_5(%arg0: i32) -> (i32, i32) {
    %c0_i32 = arith.constant 0 : i32
    %c0_i32_0 = arith.constant 0 : i32
    %c0_i32_1 = arith.constant 0 : i32
    return %c0_i32, %c0_i32_0 : i32, i32
  }
  func.func @transform_6(%arg0: i32) -> (i32, i32) {
    %c0_i32 = arith.constant 0 : i32
    %c0_i32_0 = arith.constant 0 : i32
    %c0_i32_1 = arith.constant 0 : i32
    return %c0_i32, %c0_i32_0 : i32, i32
  }
  func.func @transform_7(%arg0: i32) -> (i32, i32) {
    %c0_i32 = arith.constant 0 : i32
    %c0_i32_0 = arith.constant 0 : i32
    %c0_i32_1 = arith.constant 0 : i32
    return %c0_i32, %c0_i32_0 : i32, i32
  }
  func.func @transform_8(%arg0: i32) -> (i32, i32) {
    %c0_i32 = arith.constant 0 : i32
    %c0_i32_0 = arith.constant 0 : i32
    %c0_i32_1 = arith.constant 0 : i32
    return %c0_i32, %c0_i32_0 : i32, i32
  }
  func.func @transform_9(%arg0: i32) -> (i32, i32) {
    %c0_i32 = arith.constant 0 : i32
    %c0_i32_0 = arith.constant 0 : i32
    %c0_i32_1 = arith.constant 0 : i32
    return %c0_i32, %c0_i32_0 : i32, i32
  }
  func.func @transform_10(%arg0: i32) -> (i32, i32) {
    %c0_i32 = arith.constant 0 : i32
    %c0_i32_0 = arith.constant 0 : i32
    %c0_i32_1 = arith.constant 0 : i32
    return %c0_i32, %c0_i32_0 : i32, i32
  }
  func.func @transform_11(%arg0: i32) -> (i32, i32) {
    %c0_i32 = arith.constant 0 : i32
    %c0_i32_0 = arith.constant 0 : i32
    %c0_i32_1 = arith.constant 0 : i32
    return %c0_i32, %c0_i32_0 : i32, i32
  }
  func.func @transform_12(%arg0: i32) -> (i32, i32) {
    %c0_i32 = arith.constant 0 : i32
    %c0_i32_0 = arith.constant 0 : i32
    %c0_i32_1 = arith.constant 0 : i32
    return %c0_i32, %c0_i32_0 : i32, i32
  }
  func.func @transform_13(%arg0: i32) -> (i32, i32) {
    %c0_i32 = arith.constant 0 : i32
    %c0_i32_0 = arith.constant 0 : i32
    %c0_i32_1 = arith.constant 0 : i32
    return %c0_i32, %c0_i32_0 : i32, i32
  }
  func.func @transform_14(%arg0: i32) -> (i32, i32) {
    %c0_i32 = arith.constant 0 : i32
    %c0_i32_0 = arith.constant 0 : i32
    %c0_i32_1 = arith.constant 0 : i32
    return %c0_i32, %c0_i32_0 : i32, i32
  }
  func.func @transform_15(%arg0: i32) -> (i32, i32) {
    %c0_i32 = arith.constant 0 : i32
    %c0_i32_0 = arith.constant 0 : i32
    %c0_i32_1 = arith.constant 0 : i32
    return %c0_i32, %c0_i32_0 : i32, i32
  }
  func.func @transform_16(%arg0: i32) -> (i32, i32) {
    %c0_i32 = arith.constant 0 : i32
    %c0_i32_0 = arith.constant 0 : i32
    return %c0_i32, %arg0 : i32, i32
  }
}

</mosaic_0001>

<llo_original>
// kernel: tpu_custom_call.1
$region0: #{tpu_custom_call.1}
  #allocation0 [shape = 'u32[]', space=smem, size = 0x4, offset = 0x4, fixed_abs, tag = 'smem constant byte address 0x4 - core index']
  #allocation1 [shape = 'u32[144,128]{1,0:T(1,128)}', space=vmem, size = 0x12000, scoped, tag = 'internal scratch']
  %s0 = inlined_call_operand.vmem [shape: f32[2,128], index: 0, kind: input, shape index: {}]
  %s1 = inlined_call_operand.vmem [shape: f32[32,4], index: 1, kind: input, shape index: {}]
  %s2 = inlined_call_operand.vmem [shape: f32[32,4], index: 2, kind: input, shape index: {}]
  %s3 = inlined_call_operand.vmem [shape: f32[32,1], index: 3, kind: input, shape index: {}]
  %s4 = inlined_call_operand.vmem [shape: f32[128,32], index: 4, kind: input, shape index: {}]
  %s5 = inlined_call_operand.vmem [shape: f32[128,32], index: 5, kind: input, shape index: {}]
  %s6 = inlined_call_operand.vmem [shape: f32[128,32], index: 6, kind: input, shape index: {}]
  %s7 = inlined_call_operand.vmem [shape: f32[128,1], index: 7, kind: input, shape index: {}]
  %s8 = inlined_call_operand.vmem [shape: f32[128,128], index: 8, kind: input, shape index: {}]
  %s9 = inlined_call_operand.vmem [shape: f32[128,1], index: 9, kind: input, shape index: {}]
  %s10 = inlined_call_operand.vmem [shape: f32[128,128], index: 10, kind: input, shape index: {}]
  %s11 = inlined_call_operand.vmem [shape: f32[128,1], index: 11, kind: input, shape index: {}]
  %s12 = inlined_call_operand.vmem [shape: f32[128,128], index: 12, kind: input, shape index: {}]
  %s13 = inlined_call_operand.vmem [shape: f32[128,1], index: 13, kind: input, shape index: {}]
  %s14 = inlined_call_operand.vmem [shape: f32[2,128], index: 14, kind: input, shape index: {}]
  %s15 = inlined_call_operand.vmem [shape: f32[2,1], index: 15, kind: input, shape index: {}]
  %s16 = inlined_call_operand.hbm [shape: f32[2,128], index: 16, kind: output, shape index: {}]
  %s17 = sld [smem:[#allocation0]]
  $region74: #{tpu_custom_call.1} parent=0
    _
  %s19 = ssub.s32 1, %s17
  %s20 = scalar_select 0, %s19, %s17
  $region1: #{tpu_custom_call.1} parent=0
    #allocation2 [shape = 'u8[1024]{0}', space=vmem, size = 0x400, scoped, tag = 'output window, operand 0, single buffered']
    #allocation3 [shape = 's32[1]{0}', space=sflag, size = 0x4, scoped, tag = 'scoped memory for tpu_custom_call.1']
    %21 = vsyncpa [#allocation3], 0
    // Predicated region
    $region2: #{tpu_custom_call.1} parent=1 // pred_check
      _
    $region3: #{tpu_custom_call.1} parent=1 // pred_check_branch
      %23 = sbr.rel (0) target = $region5
    $region4: #{tpu_custom_call.1} parent=1 // pred_region
      _
    $region5: #{tpu_custom_call.1} parent=1 // pred_fallthru
      _
    // Predicated region
    $region6: #{tpu_custom_call.1} parent=1 // pred_check
      _
    $region7: #{tpu_custom_call.1} parent=1 // pred_check_branch
      %25 = sbr.rel (0) target = $region9
    $region8: #{tpu_custom_call.1} parent=1 // pred_region
      _
    $region9: #{tpu_custom_call.1} parent=1 // pred_fallthru
      _
    // Predicated region
    $region10: #{tpu_custom_call.1} parent=1 // pred_check
      _
    $region11: #{tpu_custom_call.1} parent=1 // pred_check_branch
      %27 = sbr.rel (0) target = $region13
    $region12: #{tpu_custom_call.1} parent=1 // pred_region
      _
    $region13: #{tpu_custom_call.1} parent=1 // pred_fallthru
      _
    // Predicated region
    $region14: #{tpu_custom_call.1} parent=1 // pred_check
      _
    $region15: #{tpu_custom_call.1} parent=1 // pred_check_branch
      %29 = sbr.rel (0) target = $region17
    $region16: #{tpu_custom_call.1} parent=1 // pred_region
      _
    $region17: #{tpu_custom_call.1} parent=1 // pred_fallthru
      _
    // Predicated region
    $region18: #{tpu_custom_call.1} parent=1 // pred_check
      _
    $region19: #{tpu_custom_call.1} parent=1 // pred_check_branch
      %31 = sbr.rel (0) target = $region21
    $region20: #{tpu_custom_call.1} parent=1 // pred_region
      _
    $region21: #{tpu_custom_call.1} parent=1 // pred_fallthru
      _
    // Predicated region
    $region22: #{tpu_custom_call.1} parent=1 // pred_check
      _
    $region23: #{tpu_custom_call.1} parent=1 // pred_check_branch
      %33 = sbr.rel (0) target = $region25
    $region24: #{tpu_custom_call.1} parent=1 // pred_region
      _
    $region25: #{tpu_custom_call.1} parent=1 // pred_fallthru
      _
    // Predicated region
    $region26: #{tpu_custom_call.1} parent=1 // pred_check
      _
    $region27: #{tpu_custom_call.1} parent=1 // pred_check_branch
      %35 = sbr.rel (0) target = $region29
    $region28: #{tpu_custom_call.1} parent=1 // pred_region
      _
    $region29: #{tpu_custom_call.1} parent=1 // pred_fallthru
      _
    // Predicated region
    $region30: #{tpu_custom_call.1} parent=1 // pred_check
      _
    $region31: #{tpu_custom_call.1} parent=1 // pred_check_branch
      %37 = sbr.rel (0) target = $region33
    $region32: #{tpu_custom_call.1} parent=1 // pred_region
      _
    $region33: #{tpu_custom_call.1} parent=1 // pred_fallthru
      _
    // Predicated region
    $region34: #{tpu_custom_call.1} parent=1 // pred_check
      _
    $region35: #{tpu_custom_call.1} parent=1 // pred_check_branch
      %39 = sbr.rel (0) target = $region37
    $region36: #{tpu_custom_call.1} parent=1 // pred_region
      _
    $region37: #{tpu_custom_call.1} parent=1 // pred_fallthru
      _
    // Predicated region
    $region38: #{tpu_custom_call.1} parent=1 // pred_check
      _
    $region39: #{tpu_custom_call.1} parent=1 // pred_check_branch
      %41 = sbr.rel (0) target = $region41
    $region40: #{tpu_custom_call.1} parent=1 // pred_region
      _
    $region41: #{tpu_custom_call.1} parent=1 // pred_fallthru
      _
    // Predicated region
    $region42: #{tpu_custom_call.1} parent=1 // pred_check
      _
    $region43: #{tpu_custom_call.1} parent=1 // pred_check_branch
      %43 = sbr.rel (0) target = $region45
    $region44: #{tpu_custom_call.1} parent=1 // pred_region
      _
    $region45: #{tpu_custom_call.1} parent=1 // pred_fallthru
      _
    // Predicated region
    $region46: #{tpu_custom_call.1} parent=1 // pred_check
      _
    $region47: #{tpu_custom_call.1} parent=1 // pred_check_branch
      %45 = sbr.rel (0) target = $region49
    $region48: #{tpu_custom_call.1} parent=1 // pred_region
      _
    $region49: #{tpu_custom_call.1} parent=1 // pred_fallthru
      _
    // Predicated region
    $region50: #{tpu_custom_call.1} parent=1 // pred_check
      _
    $region51: #{tpu_custom_call.1} parent=1 // pred_check_branch
      %47 = sbr.rel (0) target = $region53
    $region52: #{tpu_custom_call.1} parent=1 // pred_region
      _
    $region53: #{tpu_custom_call.1} parent=1 // pred_fallthru
      _
    // Predicated region
    $region54: #{tpu_custom_call.1} parent=1 // pred_check
      _
    $region55: #{tpu_custom_call.1} parent=1 // pred_check_branch
      %49 = sbr.rel (0) target = $region57
    $region56: #{tpu_custom_call.1} parent=1 // pred_region
      _
    $region57: #{tpu_custom_call.1} parent=1 // pred_fallthru
      _
    // Predicated region
    $region58: #{tpu_custom_call.1} parent=1 // pred_check
      _
    $region59: #{tpu_custom_call.1} parent=1 // pred_check_branch
      %51 = sbr.rel (0) target = $region61
    $region60: #{tpu_custom_call.1} parent=1 // pred_region
      _
    $region61: #{tpu_custom_call.1} parent=1 // pred_fallthru
      _
    // Predicated region
    $region62: #{tpu_custom_call.1} parent=1 // pred_check
      _
    $region63: #{tpu_custom_call.1} parent=1 // pred_check_branch
      %53 = sbr.rel (0) target = $region65
    $region64: #{tpu_custom_call.1} parent=1 // pred_region
      _
    $region65: #{tpu_custom_call.1} parent=1 // pred_fallthru
      _
    %v54 = vld [vmem:[%s0] sm:$0x3]
    %v55 = vsub.f32 %v54, 0.0001
    %v57 = vrot.slane %v55, 7
    %v59 = vand.u32 2147483647, %v57
    %v60 = vand.u32 2147483647, %v55
    %v61 = vmin.f32 %v59, %v60
    %v62 = vmax.f32 %v59, %v60
    %v63 = vrcp.pop %v62
    %v64 = vmul.f32 %v61, %v63
    %v65 = vmul.f32 %v64, %v64
    %v66 = vmul.f32 0.002785687, %v65
    %v67 = vadd.f32 %v66, -0.015866
    %v68 = vmul.f32 %v67, %v65
    %v69 = vadd.f32 %v68, 0.04247222
    %v70 = vmul.f32 %v69, %v65
    %v71 = vadd.f32 %v70, -0.074975304
    %v72 = vmul.f32 %v71, %v65
    %v73 = vadd.f32 %v72, 0.1064488
    %v74 = vmul.f32 %v73, %v65
    %v75 = vadd.f32 %v74, -0.14207031
    %v76 = vmul.f32 %v75, %v65
    %v77 = vadd.f32 %v76, 0.19993454
    %v78 = vmul.f32 %v77, %v65
    %v79 = vadd.f32 %v78, -0.33333147
    %v80 = vmul.f32 %v79, %v65
    %v81 = vmul.f32 %v80, %v64
    %v82 = vadd.f32 %v81, %v64
    %vm83 = vcmp.gt.f32.partialorder %v60, %v59
    %v84 = vsub.f32 1.5707964, %v82
    %v85 = vsel %vm83, %v84, %v82
    %vm86 = vcmp.lt.f32.partialorder %v57, 0.0
    %v87 = vsub.f32 3.1415927, %v85
    %v88 = vsel %vm86, %v87, %v85
    %vm89 = vcmp.lt.s32.totalorder %v57, 0
    %v90 = vsel %vm89, 3.1415927, 0.0
    %vm91 = vcmp.eq.f32.partialorder %v55, 0.0
    %v92 = vsel %vm91, %v90, %v88
    %vm93 = vcmp.ne.f32.partialorder %v57, %v57
    %vm94 = vcmp.ne.f32.partialorder %v55, %v55
    %vm95 = vmor %vm93, %vm94
    %v96 = vsel %vm95, nan, %v92
    %vm97 = vcmp.lt.f32.partialorder %v57, 0.0
    %v98 = vsel %vm97, 2.3561945, 0.7853982
    %vm99 = vcmp.eq.s32.totalorder %v59, inf
    %vm100 = vcmp.eq.s32.totalorder %v60, inf
    %vm101 = vmand %vm99, %vm100
    %v102 = vsel %vm101, %v98, %v96
    %v103 = vand.u32 2147483647, %v102
    %v104 = vand.u32 %v55, 2147483648
    %v105 = vor.u32 %v103, %v104
    %v106 = vmul.f32 %v55, %v55
    %v108 = vrot.slane %v106, 1
    %v110 = vadd.f32 %v106, %v108
    %v111 = vrsqrt.pop %v110
    %v112 = vmul.f32 %v110, %v111
    %vm113 = vcmp.eq.f32.partialorder %v110, inf
    %v114 = vsel %vm113, %v110, %v112
    %vm115 = vcmp.eq.f32.partialorder %v110, 0.0
    %v116 = vand.u32 %v110, 2147483648
    %v117 = vsel %vm115, %v116, %v114
    %v119 = vrot.slane %v105, 7
    %v122 = vrot.slane %v117, 5
    %vm124 = vcmask 1041408
    %v125 = vsel %vm124, %v54, %v119
    %vm126 = vcmask 1042432
    %v127 = vsel %vm126, %v125, %v122
    %v128 = vld [vmem:[%s1] sm:$0xff]
    %v129 = vld [vmem:[%s1 + $0x8] sm:$0xff]
    %v130 = vld [vmem:[%s1 + $0x10] sm:$0xff]
    %v131 = vld [vmem:[%s1 + $0x18] sm:$0xff]
    %vm132 = vcmask 31744
    %v134 = vsel %vm132, %v128, 0
    %v137 = vsel %vm132, %v129, 0
    %v140 = vsel %vm132, %v130, 0
    %v143 = vsel %vm132, %v131, 0
    %vm145 = vcmask 1043456
    %v147 = vsel %vm145, %v127, 0
    %149 = vmatprep.subr.mxu0 0.0
    %150 = vmatpush1.msra.mxu0 %v147
    %151 = vmatprep.subr.mxu0 0.0
    %152 = vmatpush1.msra.mxu0 0.0
    %153 = vmatprep.subr.mxu0 0.0
    %154 = vmatpush1.msra.mxu0 0.0
    %155 = vmatprep.subr.mxu0 0.0
    %156 = vmatpush1.msra.mxu0 0.0
    %157 = vmatprep.subr.mxu0 0.0
    %158 = vmatpush1.msra.mxu0 0.0
    %159 = vmatprep.subr.mxu0 0.0
    %160 = vmatpush1.msra.mxu0 0.0
    %161 = vmatprep.subr.mxu0 0.0
    %162 = vmatpush1.msra.mxu0 0.0
    %163 = vmatprep.subr.mxu0 0.0
    %164 = vmatpush1.msra.mxu0 0.0
    %165 = vmatprep.subr.mxu0 0.0
    %166 = vmatpush1.msra.mxu0 0.0
    %167 = vmatprep.subr.mxu0 0.0
    %168 = vmatpush1.msra.mxu0 0.0
    %169 = vmatprep.subr.mxu0 0.0
    %170 = vmatpush1.msra.mxu0 0.0
    %171 = vmatprep.subr.mxu0 0.0
    %172 = vmatpush1.msra.mxu0 0.0
    %173 = vmatprep.subr.mxu0 0.0
    %174 = vmatpush1.msra.mxu0 0.0
    %175 = vmatprep.subr.mxu0 0.0
    %176 = vmatpush1.msra.mxu0 0.0
    %177 = vmatprep.subr.mxu0 0.0
    %178 = vmatpush1.msra.mxu0 0.0
    %179 = vmatprep.subr.mxu0 0.0
    %180 = vmatpush1.msra.mxu0 0.0
    %181 = vmatprep.subr.mxu0 0.0
    %182 = vmatpush1.msra.mxu0 0.0
    %183 = vmatprep.subr.mxu0 0.0
    %184 = vmatpush1.msra.mxu0 0.0
    %185 = vmatprep.subr.mxu0 0.0
    %186 = vmatpush1.msra.mxu0 0.0
    %187 = vmatprep.subr.mxu0 0.0
    %188 = vmatpush1.msra.mxu0 0.0
    %189 = vmatprep.subr.mxu0 0.0
    %190 = vmatpush1.msra.mxu0 0.0
    %191 = vmatprep.subr.mxu0 0.0
    %192 = vmatpush1.msra.mxu0 0.0
    %193 = vmatprep.subr.mxu0 0.0
    %194 = vmatpush1.msra.mxu0 0.0
    %195 = vmatprep.subr.mxu0 0.0
    %196 = vmatpush1.msra.mxu0 0.0
    %197 = vmatprep.subr.mxu0 0.0
    %198 = vmatpush1.msra.mxu0 0.0
    %199 = vmatprep.subr.mxu0 0.0
    %200 = vmatpush1.msra.mxu0 0.0
    %201 = vmatprep.subr.mxu0 0.0
    %202 = vmatpush1.msra.mxu0 0.0
    %203 = vmatprep.subr.mxu0 0.0
    %204 = vmatpush1.msra.mxu0 0.0
    %205 = vmatprep.subr.mxu0 0.0
    %206 = vmatpush1.msra.mxu0 0.0
    %207 = vmatprep.subr.mxu0 0.0
    %208 = vmatpush1.msra.mxu0 0.0
    %209 = vmatprep.subr.mxu0 0.0
    %210 = vmatpush1.msra.mxu0 0.0
    %211 = vmatprep.subr.mxu0 0.0
    %212 = vmatpush1.msra.mxu0 0.0
    %213 = vmatprep.mubr.f32.mxu0 0.0
    %214 = vmatmul.mubr.f32.gmra.mrb[0].mxu0 %v134
    %v215 = vpop.f32.mrb[0].mxu0
    %v216 = vadd.f32 0.0, %v215
    %v217 = vpop.f32.mrb[0].mxu0
    %218 = vmatprep.mubr.f32.mxu0 0.0
    %219 = vmatmul.mubr.f32.gmra.mrb[0].mxu0 %v137
    %v220 = vpop.f32.mrb[0].mxu0
    %v221 = vadd.f32 0.0, %v220
    %v222 = vpop.f32.mrb[0].mxu0
    %223 = vmatprep.mubr.f32.mxu0 0.0
    %224 = vmatmul.mubr.f32.gmra.mrb[0].mxu0 %v140
    %v225 = vpop.f32.mrb[0].mxu0
    %v226 = vadd.f32 0.0, %v225
    %v227 = vpop.f32.mrb[0].mxu0
    %228 = vmatprep.mubr.f32.mxu0 0.0
    %229 = vmatmul.mubr.f32.gmra.mrb[0].mxu0 %v143
    %v230 = vpop.f32.mrb[0].mxu0
    %v231 = vadd.f32 0.0, %v230
    %v232 = vpop.f32.mrb[0].mxu0
    %233 = vdwg.mxu0
    %v234 = vand.u32 2147483647, %v216
    %vm235 = vcmp.le.f32.partialorder %v234, 0.7853982
    %vm236 = vcmp.lt.s32.totalorder %v216, 0
    %v237 = vand.u32 %v216, 2139095040
    %v238 = vshrl.u32 %v237, 23
    %v239 = vsub.s32 %v238, 127
    %v240 = vand.u32 2147483647, %v216
    %v241 = vand.u32 %v240, 8388607
    %v242 = vor.u32 %v241, 8388608
    %v243 = vsub.s32 0, %v242
    %v244 = vadd.s32 %v239, 1
    %vm245 = vcmp.gt.s32.totalorder %v244, 0
    %v246 = vsel %vm245, %v244, 0
    %v247 = vshrl.u32 %v246, 5
    %v248 = vand.u32 %v246, 31
    %v249 = vsub.s32 32, %v248
    %v250 = vshrl.u32 683565275, %v249
    %v251 = vshll.u32 683565275, %v248
    %v252 = vshrl.u32 2475754826, %v249
    %v253 = vor.u32 %v251, %v252
    %v254 = vshll.u32 2475754826, %v248
    %v255 = vshrl.u32 2131351028, %v249
    %v256 = vor.u32 %v254, %v255
    %v257 = vshll.u32 2131351028, %v248
    %v258 = vshrl.u32 2102212464, %v249
    %v259 = vor.u32 %v257, %v258
    %v260 = vshll.u32 2102212464, %v248
    %v261 = vshrl.u32 920167782, %v249
    %v262 = vor.u32 %v260, %v261
    %v263 = vshll.u32 920167782, %v248
    %v264 = vshrl.u32 1326507024, %v249
    %v265 = vor.u32 %v263, %v264
    %vm266 = vcmp.lt.s32.totalorder %v247, 1
    %vm267 = vcmp.lt.s32.totalorder %v247, 2
    %vm268 = vcmp.lt.s32.totalorder %v247, 3
    %vm269 = vcmp.lt.s32.totalorder %v247, 4
    %v270 = vsel %vm266, %v250, %v253
    %v271 = vsel %vm269, %v259, 2102212464
    %v272 = vsel %vm268, %v256, %v271
    %v273 = vsel %vm267, %v270, %v272
    %v274 = vsel %vm266, %v253, %v256
    %v275 = vsel %vm269, %v262, 920167782
    %v276 = vsel %vm268, %v259, %v275
    %v277 = vsel %vm267, %v274, %v276
    %v278 = vsel %vm266, %v256, %v259
    %v279 = vsel %vm269, %v265, 1326507024
    %v280 = vsel %vm268, %v262, %v279
    %v281 = vsel %vm267, %v278, %v280
    %v282 = vshll.u32 %v242, 8
    %v283 = vmul.u32.u64.compose %v282, %v281
    %v284 = vextract.low.u32 %v283
    %v285 = vextract.high.u32 %v283
    %v286 = vmul.u32.u64.compose %v282, %v277
    %v287 = vextract.low.u32 %v286
    %v288 = vextract.high.u32 %v286
    %v289 = vmul.u32 %v282, %v273
    %v290 = vadd.s32 %v285, %v287
    %vm291 = vc.u32 %v285, %v287
    %v292 = vadd.s32 %v288, 1
    %v293 = vsel %vm291, %v292, %v288
    %v294 = vadd.s32 %v289, %v293
    %v295 = vadd.s32 %v294, 536870912
    %v296 = vshrl.u32 %v295, 30
    %v297 = vshll.u32 %v296, 30
    %v298 = vsub.s32 %v294, %v297
    %vm299 = vcmp.lt.s32.totalorder %v298, 0
    %v300 = vsub.s32 0, %v298
    %v301 = vsel %vm299, %v300, %v298
    %v302 = vclz %v301
    %v303 = vsub.s32 %v302, 2
    %vm304 = vcmp.gt.s32.totalorder 0, %v303
    %v305 = vsel %vm304, 0, %v303
    %v306 = vsub.s32 32, %v305
    %v307 = vshll.u32 %v298, %v305
    %v308 = vshrl.u32 %v290, %v306
    %v309 = vor.u32 %v307, %v308
    %v310 = vsub.s32 4294967266, %v305
    %v311 = vadd.s32 %v310, 127
    %v312 = vshll.u32 %v311, 23
    %v313 = vor.u32 4788187, %v312
    %v314 = vand.u32 2147483647, %v313
    %v316 = vcvt.s32.f32 %v309
    %v317 = vmul.f32 %v316, %v314
    %v318 = vxor.u32 %v317, 2147483648
    %v319 = vsel %vm236, %v318, %v317
    %v320 = vsub.s32 4, %v296
    %v321 = vsel %vm236, %v320, %v296
    %v322 = vsel %vm235, %v216, %v319
    %v323 = vsel %vm235, 0, %v321
    %v324 = vcosq.f32.pop %v322
    %v325 = vsinq.f32.pop %v322
    %vm326 = vweird.f32 %v216
    %v327 = vadd.s32 %v323, 3
    %v328 = vand.u32 %v327, 3
    %vm329 = vcmp.lt.s32.totalorder %v328, 2
    %vm330 = vcmp.eq.s32.totalorder %v328, 0
    %v331 = vxor.u32 %v325, 2147483648
    %v332 = vsel %vm330, %v324, %v331
    %vm333 = vcmp.eq.s32.totalorder %v328, 2
    %v334 = vxor.u32 %v324, 2147483648
    %v335 = vsel %vm333, %v334, %v325
    %v336 = vsel %vm329, %v332, %v335
    %v337 = vsel %vm326, nan, %v336
    %v338 = vand.u32 2147483647, %v221
    %vm339 = vcmp.le.f32.partialorder %v338, 0.7853982
    %vm340 = vcmp.lt.s32.totalorder %v221, 0
    %v341 = vand.u32 %v221, 2139095040
    %v342 = vshrl.u32 %v341, 23
    %v343 = vsub.s32 %v342, 127
    %v344 = vand.u32 2147483647, %v221
    %v345 = vand.u32 %v344, 8388607
    %v346 = vor.u32 %v345, 8388608
    %v347 = vsub.s32 0, %v346
    %v348 = vadd.s32 %v343, 1
    %vm349 = vcmp.gt.s32.totalorder %v348, 0
    %v350 = vsel %vm349, %v348, 0
    %v351 = vshrl.u32 %v350, 5
    %v352 = vand.u32 %v350, 31
    %v353 = vsub.s32 32, %v352
    %v354 = vshrl.u32 683565275, %v353
    %v355 = vshll.u32 683565275, %v352
    %v356 = vshrl.u32 2475754826, %v353
    %v357 = vor.u32 %v355, %v356
    %v358 = vshll.u32 2475754826, %v352
    %v359 = vshrl.u32 2131351028, %v353
    %v360 = vor.u32 %v358, %v359
    %v361 = vshll.u32 2131351028, %v352
    %v362 = vshrl.u32 2102212464, %v353
    %v363 = vor.u32 %v361, %v362
    %v364 = vshll.u32 2102212464, %v352
    %v365 = vshrl.u32 920167782, %v353
    %v366 = vor.u32 %v364, %v365
    %v367 = vshll.u32 920167782, %v352
    %v368 = vshrl.u32 1326507024, %v353
    %v369 = vor.u32 %v367, %v368
    %vm370 = vcmp.lt.s32.totalorder %v351, 1
    %vm371 = vcmp.lt.s32.totalorder %v351, 2
    %vm372 = vcmp.lt.s32.totalorder %v351, 3
    %vm373 = vcmp.lt.s32.totalorder %v351, 4
    %v374 = vsel %vm370, %v354, %v357
    %v375 = vsel %vm373, %v363, 2102212464
    %v376 = vsel %vm372, %v360, %v375
    %v377 = vsel %vm371, %v374, %v376
    %v378 = vsel %vm370, %v357, %v360
    %v379 = vsel %vm373, %v366, 920167782
    %v380 = vsel %vm372, %v363, %v379
    %v381 = vsel %vm371, %v378, %v380
    %v382 = vsel %vm370, %v360, %v363
    %v383 = vsel %vm373, %v369, 1326507024
    %v384 = vsel %vm372, %v366, %v383
    %v385 = vsel %vm371, %v382, %v384
    %v386 = vshll.u32 %v346, 8
    %v387 = vmul.u32.u64.compose %v386, %v385
    %v388 = vextract.low.u32 %v387
    %v389 = vextract.high.u32 %v387
    %v390 = vmul.u32.u64.compose %v386, %v381
    %v391 = vextract.low.u32 %v390
    %v392 = vextract.high.u32 %v390
    %v393 = vmul.u32 %v386, %v377
    %v394 = vadd.s32 %v389, %v391
    %vm395 = vc.u32 %v389, %v391
    %v396 = vadd.s32 %v392, 1
    %v397 = vsel %vm395, %v396, %v392
    %v398 = vadd.s32 %v393, %v397
    %v399 = vadd.s32 %v398, 536870912
    %v400 = vshrl.u32 %v399, 30
    %v401 = vshll.u32 %v400, 30
    %v402 = vsub.s32 %v398, %v401
    %vm403 = vcmp.lt.s32.totalorder %v402, 0
    %v404 = vsub.s32 0, %v402
    %v405 = vsel %vm403, %v404, %v402
    %v406 = vclz %v405
    %v407 = vsub.s32 %v406, 2
    %vm408 = vcmp.gt.s32.totalorder 0, %v407
    %v409 = vsel %vm408, 0, %v407
    %v410 = vsub.s32 32, %v409
    %v411 = vshll.u32 %v402, %v409
    %v412 = vshrl.u32 %v394, %v410
    %v413 = vor.u32 %v411, %v412
    %v414 = vsub.s32 4294967266, %v409
    %v415 = vadd.s32 %v414, 127
    %v416 = vshll.u32 %v415, 23
    %v417 = vor.u32 4788187, %v416
    %v418 = vand.u32 2147483647, %v417
    %v420 = vcvt.s32.f32 %v413
    %v421 = vmul.f32 %v420, %v418
    %v422 = vxor.u32 %v421, 2147483648
    %v423 = vsel %vm340, %v422, %v421
    %v424 = vsub.s32 4, %v400
    %v425 = vsel %vm340, %v424, %v400
    %v426 = vsel %vm339, %v221, %v423
    %v427 = vsel %vm339, 0, %v425
    %v428 = vcosq.f32.pop %v426
    %v429 = vsinq.f32.pop %v426
    %vm430 = vweird.f32 %v221
    %v431 = vadd.s32 %v427, 3
    %v432 = vand.u32 %v431, 3
    %vm433 = vcmp.lt.s32.totalorder %v432, 2
    %vm434 = vcmp.eq.s32.totalorder %v432, 0
    %v435 = vxor.u32 %v429, 2147483648
    %v436 = vsel %vm434, %v428, %v435
    %vm437 = vcmp.eq.s32.totalorder %v432, 2
    %v438 = vxor.u32 %v428, 2147483648
    %v439 = vsel %vm437, %v438, %v429
    %v440 = vsel %vm433, %v436, %v439
    %v441 = vsel %vm430, nan, %v440
    %v442 = vand.u32 2147483647, %v226
    %vm443 = vcmp.le.f32.partialorder %v442, 0.7853982
    %vm444 = vcmp.lt.s32.totalorder %v226, 0
    %v445 = vand.u32 %v226, 2139095040
    %v446 = vshrl.u32 %v445, 23
    %v447 = vsub.s32 %v446, 127
    %v448 = vand.u32 2147483647, %v226
    %v449 = vand.u32 %v448, 8388607
    %v450 = vor.u32 %v449, 8388608
    %v451 = vsub.s32 0, %v450
    %v452 = vadd.s32 %v447, 1
    %vm453 = vcmp.gt.s32.totalorder %v452, 0
    %v454 = vsel %vm453, %v452, 0
    %v455 = vshrl.u32 %v454, 5
    %v456 = vand.u32 %v454, 31
    %v457 = vsub.s32 32, %v456
    %v458 = vshrl.u32 683565275, %v457
    %v459 = vshll.u32 683565275, %v456
    %v460 = vshrl.u32 2475754826, %v457
    %v461 = vor.u32 %v459, %v460
    %v462 = vshll.u32 2475754826, %v456
    %v463 = vshrl.u32 2131351028, %v457
    %v464 = vor.u32 %v462, %v463
    %v465 = vshll.u32 2131351028, %v456
    %v466 = vshrl.u32 2102212464, %v457
    %v467 = vor.u32 %v465, %v466
    %v468 = vshll.u32 2102212464, %v456
    %v469 = vshrl.u32 920167782, %v457
    %v470 = vor.u32 %v468, %v469
    %v471 = vshll.u32 920167782, %v456
    %v472 = vshrl.u32 1326507024, %v457
    %v473 = vor.u32 %v471, %v472
    %vm474 = vcmp.lt.s32.totalorder %v455, 1
    %vm475 = vcmp.lt.s32.totalorder %v455, 2
    %vm476 = vcmp.lt.s32.totalorder %v455, 3
    %vm477 = vcmp.lt.s32.totalorder %v455, 4
    %v478 = vsel %vm474, %v458, %v461
    %v479 = vsel %vm477, %v467, 2102212464
    %v480 = vsel %vm476, %v464, %v479
    %v481 = vsel %vm475, %v478, %v480
    %v482 = vsel %vm474, %v461, %v464
    %v483 = vsel %vm477, %v470, 920167782
    %v484 = vsel %vm476, %v467, %v483
    %v485 = vsel %vm475, %v482, %v484
    %v486 = vsel %vm474, %v464, %v467
    %v487 = vsel %vm477, %v473, 1326507024
    %v488 = vsel %vm476, %v470, %v487
    %v489 = vsel %vm475, %v486, %v488
    %v490 = vshll.u32 %v450, 8
    %v491 = vmul.u32.u64.compose %v490, %v489
    %v492 = vextract.low.u32 %v491
    %v493 = vextract.high.u32 %v491
    %v494 = vmul.u32.u64.compose %v490, %v485
    %v495 = vextract.low.u32 %v494
    %v496 = vextract.high.u32 %v494
    %v497 = vmul.u32 %v490, %v481
    %v498 = vadd.s32 %v493, %v495
    %vm499 = vc.u32 %v493, %v495
    %v500 = vadd.s32 %v496, 1
    %v501 = vsel %vm499, %v500, %v496
    %v502 = vadd.s32 %v497, %v501
    %v503 = vadd.s32 %v502, 536870912
    %v504 = vshrl.u32 %v503, 30
    %v505 = vshll.u32 %v504, 30
    %v506 = vsub.s32 %v502, %v505
    %vm507 = vcmp.lt.s32.totalorder %v506, 0
    %v508 = vsub.s32 0, %v506
    %v509 = vsel %vm507, %v508, %v506
    %v510 = vclz %v509
    %v511 = vsub.s32 %v510, 2
    %vm512 = vcmp.gt.s32.totalorder 0, %v511
    %v513 = vsel %vm512, 0, %v511
    %v514 = vsub.s32 32, %v513
    %v515 = vshll.u32 %v506, %v513
    %v516 = vshrl.u32 %v498, %v514
    %v517 = vor.u32 %v515, %v516
    %v518 = vsub.s32 4294967266, %v513
    %v519 = vadd.s32 %v518, 127
    %v520 = vshll.u32 %v519, 23
    %v521 = vor.u32 4788187, %v520
    %v522 = vand.u32 2147483647, %v521
    %v524 = vcvt.s32.f32 %v517
    %v525 = vmul.f32 %v524, %v522
    %v526 = vxor.u32 %v525, 2147483648
    %v527 = vsel %vm444, %v526, %v525
    %v528 = vsub.s32 4, %v504
    %v529 = vsel %vm444, %v528, %v504
    %v530 = vsel %vm443, %v226, %v527
    %v531 = vsel %vm443, 0, %v529
    %v532 = vcosq.f32.pop %v530
    %v533 = vsinq.f32.pop %v530
    %vm534 = vweird.f32 %v226
    %v535 = vadd.s32 %v531, 3
    %v536 = vand.u32 %v535, 3
    %vm537 = vcmp.lt.s32.totalorder %v536, 2
    %vm538 = vcmp.eq.s32.totalorder %v536, 0
    %v539 = vxor.u32 %v533, 2147483648
    %v540 = vsel %vm538, %v532, %v539
    %vm541 = vcmp.eq.s32.totalorder %v536, 2
    %v542 = vxor.u32 %v532, 2147483648
    %v543 = vsel %vm541, %v542, %v533
    %v544 = vsel %vm537, %v540, %v543
    %v545 = vsel %vm534, nan, %v544
    %v546 = vand.u32 2147483647, %v231
    %vm547 = vcmp.le.f32.partialorder %v546, 0.7853982
    %vm548 = vcmp.lt.s32.totalorder %v231, 0
    %v549 = vand.u32 %v231, 2139095040
    %v550 = vshrl.u32 %v549, 23
    %v551 = vsub.s32 %v550, 127
    %v552 = vand.u32 2147483647, %v231
    %v553 = vand.u32 %v552, 8388607
    %v554 = vor.u32 %v553, 8388608
    %v555 = vsub.s32 0, %v554
    %v556 = vadd.s32 %v551, 1
    %vm557 = vcmp.gt.s32.totalorder %v556, 0
    %v558 = vsel %vm557, %v556, 0
    %v559 = vshrl.u32 %v558, 5
    %v560 = vand.u32 %v558, 31
    %v561 = vsub.s32 32, %v560
    %v562 = vshrl.u32 683565275, %v561
    %v563 = vshll.u32 683565275, %v560
    %v564 = vshrl.u32 2475754826, %v561
    %v565 = vor.u32 %v563, %v564
    %v566 = vshll.u32 2475754826, %v560
    %v567 = vshrl.u32 2131351028, %v561
    %v568 = vor.u32 %v566, %v567
    %v569 = vshll.u32 2131351028, %v560
    %v570 = vshrl.u32 2102212464, %v561
    %v571 = vor.u32 %v569, %v570
    %v572 = vshll.u32 2102212464, %v560
    %v573 = vshrl.u32 920167782, %v561
    %v574 = vor.u32 %v572, %v573
    %v575 = vshll.u32 920167782, %v560
    %v576 = vshrl.u32 1326507024, %v561
    %v577 = vor.u32 %v575, %v576
    %vm578 = vcmp.lt.s32.totalorder %v559, 1
    %vm579 = vcmp.lt.s32.totalorder %v559, 2
    %vm580 = vcmp.lt.s32.totalorder %v559, 3
    %vm581 = vcmp.lt.s32.totalorder %v559, 4
    %v582 = vsel %vm578, %v562, %v565
    %v583 = vsel %vm581, %v571, 2102212464
    %v584 = vsel %vm580, %v568, %v583
    %v585 = vsel %vm579, %v582, %v584
    %v586 = vsel %vm578, %v565, %v568
    %v587 = vsel %vm581, %v574, 920167782
    %v588 = vsel %vm580, %v571, %v587
    %v589 = vsel %vm579, %v586, %v588
    %v590 = vsel %vm578, %v568, %v571
    %v591 = vsel %vm581, %v577, 1326507024
    %v592 = vsel %vm580, %v574, %v591
    %v593 = vsel %vm579, %v590, %v592
    %v594 = vshll.u32 %v554, 8
    %v595 = vmul.u32.u64.compose %v594, %v593
    %v596 = vextract.low.u32 %v595
    %v597 = vextract.high.u32 %v595
    %v598 = vmul.u32.u64.compose %v594, %v589
    %v599 = vextract.low.u32 %v598
    %v600 = vextract.high.u32 %v598
    %v601 = vmul.u32 %v594, %v585
    %v602 = vadd.s32 %v597, %v599
    %vm603 = vc.u32 %v597, %v599
    %v604 = vadd.s32 %v600, 1
    %v605 = vsel %vm603, %v604, %v600
    %v606 = vadd.s32 %v601, %v605
    %v607 = vadd.s32 %v606, 536870912
    %v608 = vshrl.u32 %v607, 30
    %v609 = vshll.u32 %v608, 30
    %v610 = vsub.s32 %v606, %v609
    %vm611 = vcmp.lt.s32.totalorder %v610, 0
    %v612 = vsub.s32 0, %v610
    %v613 = vsel %vm611, %v612, %v610
    %v614 = vclz %v613
    %v615 = vsub.s32 %v614, 2
    %vm616 = vcmp.gt.s32.totalorder 0, %v615
    %v617 = vsel %vm616, 0, %v615
    %v618 = vsub.s32 32, %v617
    %v619 = vshll.u32 %v610, %v617
    %v620 = vshrl.u32 %v602, %v618
    %v621 = vor.u32 %v619, %v620
    %v622 = vsub.s32 4294967266, %v617
    %v623 = vadd.s32 %v622, 127
    %v624 = vshll.u32 %v623, 23
    %v625 = vor.u32 4788187, %v624
    %v626 = vand.u32 2147483647, %v625
    %v628 = vcvt.s32.f32 %v621
    %v629 = vmul.f32 %v628, %v626
    %v630 = vxor.u32 %v629, 2147483648
    %v631 = vsel %vm548, %v630, %v629
    %v632 = vsub.s32 4, %v608
    %v633 = vsel %vm548, %v632, %v608
    %v634 = vsel %vm547, %v231, %v631
    %v635 = vsel %vm547, 0, %v633
    %v636 = vcosq.f32.pop %v634
    %v637 = vsinq.f32.pop %v634
    %vm638 = vweird.f32 %v231
    %v639 = vadd.s32 %v635, 3
    %v640 = vand.u32 %v639, 3
    %vm641 = vcmp.lt.s32.totalorder %v640, 2
    %vm642 = vcmp.eq.s32.totalorder %v640, 0
    %v643 = vxor.u32 %v637, 2147483648
    %v644 = vsel %vm642, %v636, %v643
    %vm645 = vcmp.eq.s32.totalorder %v640, 2
    %v646 = vxor.u32 %v636, 2147483648
    %v647 = vsel %vm645, %v646, %v637
    %v648 = vsel %vm641, %v644, %v647
    %v649 = vsel %vm638, nan, %v648
    %v650 = vand.u32 2147483647, %v216
    %vm651 = vcmp.le.f32.partialorder %v650, 0.7853982
    %vm652 = vcmp.lt.s32.totalorder %v216, 0
    %v653 = vand.u32 %v216, 2139095040
    %v654 = vshrl.u32 %v653, 23
    %v655 = vsub.s32 %v654, 127
    %v656 = vand.u32 2147483647, %v216
    %v657 = vand.u32 %v656, 8388607
    %v658 = vor.u32 %v657, 8388608
    %v659 = vsub.s32 0, %v658
    %v660 = vadd.s32 %v655, 1
    %vm661 = vcmp.gt.s32.totalorder %v660, 0
    %v662 = vsel %vm661, %v660, 0
    %v663 = vshrl.u32 %v662, 5
    %v664 = vand.u32 %v662, 31
    %v665 = vsub.s32 32, %v664
    %v666 = vshrl.u32 683565275, %v665
    %v667 = vshll.u32 683565275, %v664
    %v668 = vshrl.u32 2475754826, %v665
    %v669 = vor.u32 %v667, %v668
    %v670 = vshll.u32 2475754826, %v664
    %v671 = vshrl.u32 2131351028, %v665
    %v672 = vor.u32 %v670, %v671
    %v673 = vshll.u32 2131351028, %v664
    %v674 = vshrl.u32 2102212464, %v665
    %v675 = vor.u32 %v673, %v674
    %v676 = vshll.u32 2102212464, %v664
    %v677 = vshrl.u32 920167782, %v665
    %v678 = vor.u32 %v676, %v677
    %v679 = vshll.u32 920167782, %v664
    %v680 = vshrl.u32 1326507024, %v665
    %v681 = vor.u32 %v679, %v680
    %vm682 = vcmp.lt.s32.totalorder %v663, 1
    %vm683 = vcmp.lt.s32.totalorder %v663, 2
    %vm684 = vcmp.lt.s32.totalorder %v663, 3
    %vm685 = vcmp.lt.s32.totalorder %v663, 4
    %v686 = vsel %vm682, %v666, %v669
    %v687 = vsel %vm685, %v675, 2102212464
    %v688 = vsel %vm684, %v672, %v687
    %v689 = vsel %vm683, %v686, %v688
    %v690 = vsel %vm682, %v669, %v672
    %v691 = vsel %vm685, %v678, 920167782
    %v692 = vsel %vm684, %v675, %v691
    %v693 = vsel %vm683, %v690, %v692
    %v694 = vsel %vm682, %v672, %v675
    %v695 = vsel %vm685, %v681, 1326507024
    %v696 = vsel %vm684, %v678, %v695
    %v697 = vsel %vm683, %v694, %v696
    %v698 = vshll.u32 %v658, 8
    %v699 = vmul.u32.u64.compose %v698, %v697
    %v700 = vextract.low.u32 %v699
    %v701 = vextract.high.u32 %v699
    %v702 = vmul.u32.u64.compose %v698, %v693
    %v703 = vextract.low.u32 %v702
    %v704 = vextract.high.u32 %v702
    %v705 = vmul.u32 %v698, %v689
    %v706 = vadd.s32 %v701, %v703
    %vm707 = vc.u32 %v701, %v703
    %v708 = vadd.s32 %v704, 1
    %v709 = vsel %vm707, %v708, %v704
    %v710 = vadd.s32 %v705, %v709
    %v711 = vadd.s32 %v710, 536870912
    %v712 = vshrl.u32 %v711, 30
    %v713 = vshll.u32 %v712, 30
    %v714 = vsub.s32 %v710, %v713
    %vm715 = vcmp.lt.s32.totalorder %v714, 0
    %v716 = vsub.s32 0, %v714
    %v717 = vsel %vm715, %v716, %v714
    %v718 = vclz %v717
    %v719 = vsub.s32 %v718, 2
    %vm720 = vcmp.gt.s32.totalorder 0, %v719
    %v721 = vsel %vm720, 0, %v719
    %v722 = vsub.s32 32, %v721
    %v723 = vshll.u32 %v714, %v721
    %v724 = vshrl.u32 %v706, %v722
    %v725 = vor.u32 %v723, %v724
    %v726 = vsub.s32 4294967266, %v721
    %v727 = vadd.s32 %v726, 127
    %v728 = vshll.u32 %v727, 23
    %v729 = vor.u32 4788187, %v728
    %v730 = vand.u32 2147483647, %v729
    %v732 = vcvt.s32.f32 %v725
    %v733 = vmul.f32 %v732, %v730
    %v734 = vxor.u32 %v733, 2147483648
    %v735 = vsel %vm652, %v734, %v733
    %v736 = vsub.s32 4, %v712
    %v737 = vsel %vm652, %v736, %v712
    %v738 = vsel %vm651, %v216, %v735
    %v739 = vsel %vm651, 0, %v737
    %v740 = vcosq.f32.pop %v738
    %v741 = vsinq.f32.pop %v738
    %vm742 = vweird.f32 %v216
    %v743 = vand.u32 %v739, 3
    %vm744 = vcmp.lt.s32.totalorder %v743, 2
    %vm745 = vcmp.eq.s32.totalorder %v743, 0
    %v746 = vxor.u32 %v741, 2147483648
    %v747 = vsel %vm745, %v740, %v746
    %vm748 = vcmp.eq.s32.totalorder %v743, 2
    %v749 = vxor.u32 %v740, 2147483648
    %v750 = vsel %vm748, %v749, %v741
    %v751 = vsel %vm744, %v747, %v750
    %v752 = vsel %vm742, nan, %v751
    %v753 = vand.u32 2147483647, %v221
    %vm754 = vcmp.le.f32.partialorder %v753, 0.7853982
    %vm755 = vcmp.lt.s32.totalorder %v221, 0
    %v756 = vand.u32 %v221, 2139095040
    %v757 = vshrl.u32 %v756, 23
    %v758 = vsub.s32 %v757, 127
    %v759 = vand.u32 2147483647, %v221
    %v760 = vand.u32 %v759, 8388607
    %v761 = vor.u32 %v760, 8388608
    %v762 = vsub.s32 0, %v761
    %v763 = vadd.s32 %v758, 1
    %vm764 = vcmp.gt.s32.totalorder %v763, 0
    %v765 = vsel %vm764, %v763, 0
    %v766 = vshrl.u32 %v765, 5
    %v767 = vand.u32 %v765, 31
    %v768 = vsub.s32 32, %v767
    %v769 = vshrl.u32 683565275, %v768
    %v770 = vshll.u32 683565275, %v767
    %v771 = vshrl.u32 2475754826, %v768
    %v772 = vor.u32 %v770, %v771
    %v773 = vshll.u32 2475754826, %v767
    %v774 = vshrl.u32 2131351028, %v768
    %v775 = vor.u32 %v773, %v774
    %v776 = vshll.u32 2131351028, %v767
    %v777 = vshrl.u32 2102212464, %v768
    %v778 = vor.u32 %v776, %v777
    %v779 = vshll.u32 2102212464, %v767
    %v780 = vshrl.u32 920167782, %v768
    %v781 = vor.u32 %v779, %v780
    %v782 = vshll.u32 920167782, %v767
    %v783 = vshrl.u32 1326507024, %v768
    %v784 = vor.u32 %v782, %v783
    %vm785 = vcmp.lt.s32.totalorder %v766, 1
    %vm786 = vcmp.lt.s32.totalorder %v766, 2
    %vm787 = vcmp.lt.s32.totalorder %v766, 3
    %vm788 = vcmp.lt.s32.totalorder %v766, 4
    %v789 = vsel %vm785, %v769, %v772
    %v790 = vsel %vm788, %v778, 2102212464
    %v791 = vsel %vm787, %v775, %v790
    %v792 = vsel %vm786, %v789, %v791
    %v793 = vsel %vm785, %v772, %v775
    %v794 = vsel %vm788, %v781, 920167782
    %v795 = vsel %vm787, %v778, %v794
    %v796 = vsel %vm786, %v793, %v795
    %v797 = vsel %vm785, %v775, %v778
    %v798 = vsel %vm788, %v784, 1326507024
    %v799 = vsel %vm787, %v781, %v798
    %v800 = vsel %vm786, %v797, %v799
    %v801 = vshll.u32 %v761, 8
    %v802 = vmul.u32.u64.compose %v801, %v800
    %v803 = vextract.low.u32 %v802
    %v804 = vextract.high.u32 %v802
    %v805 = vmul.u32.u64.compose %v801, %v796
    %v806 = vextract.low.u32 %v805
    %v807 = vextract.high.u32 %v805
    %v808 = vmul.u32 %v801, %v792
    %v809 = vadd.s32 %v804, %v806
    %vm810 = vc.u32 %v804, %v806
    %v811 = vadd.s32 %v807, 1
    %v812 = vsel %vm810, %v811, %v807
    %v813 = vadd.s32 %v808, %v812
    %v814 = vadd.s32 %v813, 536870912
    %v815 = vshrl.u32 %v814, 30
    %v816 = vshll.u32 %v815, 30
    %v817 = vsub.s32 %v813, %v816
    %vm818 = vcmp.lt.s32.totalorder %v817, 0
    %v819 = vsub.s32 0, %v817
    %v820 = vsel %vm818, %v819, %v817
    %v821 = vclz %v820
    %v822 = vsub.s32 %v821, 2
    %vm823 = vcmp.gt.s32.totalorder 0, %v822
    %v824 = vsel %vm823, 0, %v822
    %v825 = vsub.s32 32, %v824
    %v826 = vshll.u32 %v817, %v824
    %v827 = vshrl.u32 %v809, %v825
    %v828 = vor.u32 %v826, %v827
    %v829 = vsub.s32 4294967266, %v824
    %v830 = vadd.s32 %v829, 127
    %v831 = vshll.u32 %v830, 23
    %v832 = vor.u32 4788187, %v831
    %v833 = vand.u32 2147483647, %v832
    %v835 = vcvt.s32.f32 %v828
    %v836 = vmul.f32 %v835, %v833
    %v837 = vxor.u32 %v836, 2147483648
    %v838 = vsel %vm755, %v837, %v836
    %v839 = vsub.s32 4, %v815
    %v840 = vsel %vm755, %v839, %v815
    %v841 = vsel %vm754, %v221, %v838
    %v842 = vsel %vm754, 0, %v840
    %v843 = vcosq.f32.pop %v841
    %v844 = vsinq.f32.pop %v841
    %vm845 = vweird.f32 %v221
    %v846 = vand.u32 %v842, 3
    %vm847 = vcmp.lt.s32.totalorder %v846, 2
    %vm848 = vcmp.eq.s32.totalorder %v846, 0
    %v849 = vxor.u32 %v844, 2147483648
    %v850 = vsel %vm848, %v843, %v849
    %vm851 = vcmp.eq.s32.totalorder %v846, 2
    %v852 = vxor.u32 %v843, 2147483648
    %v853 = vsel %vm851, %v852, %v844
    %v854 = vsel %vm847, %v850, %v853
    %v855 = vsel %vm845, nan, %v854
    %v856 = vand.u32 2147483647, %v226
    %vm857 = vcmp.le.f32.partialorder %v856, 0.7853982
    %vm858 = vcmp.lt.s32.totalorder %v226, 0
    %v859 = vand.u32 %v226, 2139095040
    %v860 = vshrl.u32 %v859, 23
    %v861 = vsub.s32 %v860, 127
    %v862 = vand.u32 2147483647, %v226
    %v863 = vand.u32 %v862, 8388607
    %v864 = vor.u32 %v863, 8388608
    %v865 = vsub.s32 0, %v864
    %v866 = vadd.s32 %v861, 1
    %vm867 = vcmp.gt.s32.totalorder %v866, 0
    %v868 = vsel %vm867, %v866, 0
    %v869 = vshrl.u32 %v868, 5
    %v870 = vand.u32 %v868, 31
    %v871 = vsub.s32 32, %v870
    %v872 = vshrl.u32 683565275, %v871
    %v873 = vshll.u32 683565275, %v870
    %v874 = vshrl.u32 2475754826, %v871
    %v875 = vor.u32 %v873, %v874
    %v876 = vshll.u32 2475754826, %v870
    %v877 = vshrl.u32 2131351028, %v871
    %v878 = vor.u32 %v876, %v877
    %v879 = vshll.u32 2131351028, %v870
    %v880 = vshrl.u32 2102212464, %v871
    %v881 = vor.u32 %v879, %v880
    %v882 = vshll.u32 2102212464, %v870
    %v883 = vshrl.u32 920167782, %v871
    %v884 = vor.u32 %v882, %v883
    %v885 = vshll.u32 920167782, %v870
    %v886 = vshrl.u32 1326507024, %v871
    %v887 = vor.u32 %v885, %v886
    %vm888 = vcmp.lt.s32.totalorder %v869, 1
    %vm889 = vcmp.lt.s32.totalorder %v869, 2
    %vm890 = vcmp.lt.s32.totalorder %v869, 3
    %vm891 = vcmp.lt.s32.totalorder %v869, 4
    %v892 = vsel %vm888, %v872, %v875
    %v893 = vsel %vm891, %v881, 2102212464
    %v894 = vsel %vm890, %v878, %v893
    %v895 = vsel %vm889, %v892, %v894
    %v896 = vsel %vm888, %v875, %v878
    %v897 = vsel %vm891, %v884, 920167782
    %v898 = vsel %vm890, %v881, %v897
    %v899 = vsel %vm889, %v896, %v898
    %v900 = vsel %vm888, %v878, %v881
    %v901 = vsel %vm891, %v887, 1326507024
    %v902 = vsel %vm890, %v884, %v901
    %v903 = vsel %vm889, %v900, %v902
    %v904 = vshll.u32 %v864, 8
    %v905 = vmul.u32.u64.compose %v904, %v903
    %v906 = vextract.low.u32 %v905
    %v907 = vextract.high.u32 %v905
    %v908 = vmul.u32.u64.compose %v904, %v899
    %v909 = vextract.low.u32 %v908
    %v910 = vextract.high.u32 %v908
    %v911 = vmul.u32 %v904, %v895
    %v912 = vadd.s32 %v907, %v909
    %vm913 = vc.u32 %v907, %v909
    %v914 = vadd.s32 %v910, 1
    %v915 = vsel %vm913, %v914, %v910
    %v916 = vadd.s32 %v911, %v915
    %v917 = vadd.s32 %v916, 536870912
    %v918 = vshrl.u32 %v917, 30
    %v919 = vshll.u32 %v918, 30
    %v920 = vsub.s32 %v916, %v919
    %vm921 = vcmp.lt.s32.totalorder %v920, 0
    %v922 = vsub.s32 0, %v920
    %v923 = vsel %vm921, %v922, %v920
    %v924 = vclz %v923
    %v925 = vsub.s32 %v924, 2
    %vm926 = vcmp.gt.s32.totalorder 0, %v925
    %v927 = vsel %vm926, 0, %v925
    %v928 = vsub.s32 32, %v927
    %v929 = vshll.u32 %v920, %v927
    %v930 = vshrl.u32 %v912, %v928
    %v931 = vor.u32 %v929, %v930
    %v932 = vsub.s32 4294967266, %v927
    %v933 = vadd.s32 %v932, 127
    %v934 = vshll.u32 %v933, 23
    %v935 = vor.u32 4788187, %v934
    %v936 = vand.u32 2147483647, %v935
    %v938 = vcvt.s32.f32 %v931
    %v939 = vmul.f32 %v938, %v936
    %v940 = vxor.u32 %v939, 2147483648
    %v941 = vsel %vm858, %v940, %v939
    %v942 = vsub.s32 4, %v918
    %v943 = vsel %vm858, %v942, %v918
    %v944 = vsel %vm857, %v226, %v941
    %v945 = vsel %vm857, 0, %v943
    %v946 = vcosq.f32.pop %v944
    %v947 = vsinq.f32.pop %v944
    %vm948 = vweird.f32 %v226
    %v949 = vand.u32 %v945, 3
    %vm950 = vcmp.lt.s32.totalorder %v949, 2
    %vm951 = vcmp.eq.s32.totalorder %v949, 0
    %v952 = vxor.u32 %v947, 2147483648
    %v953 = vsel %vm951, %v946, %v952
    %vm954 = vcmp.eq.s32.totalorder %v949, 2
    %v955 = vxor.u32 %v946, 2147483648
    %v956 = vsel %vm954, %v955, %v947
    %v957 = vsel %vm950, %v953, %v956
    %v958 = vsel %vm948, nan, %v957
    %v959 = vand.u32 2147483647, %v231
    %vm960 = vcmp.le.f32.partialorder %v959, 0.7853982
    %vm961 = vcmp.lt.s32.totalorder %v231, 0
    %v962 = vand.u32 %v231, 2139095040
    %v963 = vshrl.u32 %v962, 23
    %v964 = vsub.s32 %v963, 127
    %v965 = vand.u32 2147483647, %v231
    %v966 = vand.u32 %v965, 8388607
    %v967 = vor.u32 %v966, 8388608
    %v968 = vsub.s32 0, %v967
    %v969 = vadd.s32 %v964, 1
    %vm970 = vcmp.gt.s32.totalorder %v969, 0
    %v971 = vsel %vm970, %v969, 0
    %v972 = vshrl.u32 %v971, 5
    %v973 = vand.u32 %v971, 31
    %v974 = vsub.s32 32, %v973
    %v975 = vshrl.u32 683565275, %v974
    %v976 = vshll.u32 683565275, %v973
    %v977 = vshrl.u32 2475754826, %v974
    %v978 = vor.u32 %v976, %v977
    %v979 = vshll.u32 2475754826, %v973
    %v980 = vshrl.u32 2131351028, %v974
    %v981 = vor.u32 %v979, %v980
    %v982 = vshll.u32 2131351028, %v973
    %v983 = vshrl.u32 2102212464, %v974
    %v984 = vor.u32 %v982, %v983
    %v985 = vshll.u32 2102212464, %v973
    %v986 = vshrl.u32 920167782, %v974
    %v987 = vor.u32 %v985, %v986
    %v988 = vshll.u32 920167782, %v973
    %v989 = vshrl.u32 1326507024, %v974
    %v990 = vor.u32 %v988, %v989
    %vm991 = vcmp.lt.s32.totalorder %v972, 1
    %vm992 = vcmp.lt.s32.totalorder %v972, 2
    %vm993 = vcmp.lt.s32.totalorder %v972, 3
    %vm994 = vcmp.lt.s32.totalorder %v972, 4
    %v995 = vsel %vm991, %v975, %v978
    %v996 = vsel %vm994, %v984, 2102212464
    %v997 = vsel %vm993, %v981, %v996
    %v998 = vsel %vm992, %v995, %v997
    %v999 = vsel %vm991, %v978, %v981
    %v1000 = vsel %vm994, %v987, 920167782
    %v1001 = vsel %vm993, %v984, %v1000
    %v1002 = vsel %vm992, %v999, %v1001
    %v1003 = vsel %vm991, %v981, %v984
    %v1004 = vsel %vm994, %v990, 1326507024
    %v1005 = vsel %vm993, %v987, %v1004
    %v1006 = vsel %vm992, %v1003, %v1005
    %v1007 = vshll.u32 %v967, 8
    %v1008 = vmul.u32.u64.compose %v1007, %v1006
    %v1009 = vextract.low.u32 %v1008
    %v1010 = vextract.high.u32 %v1008
    %v1011 = vmul.u32.u64.compose %v1007, %v1002
    %v1012 = vextract.low.u32 %v1011
    %v1013 = vextract.high.u32 %v1011
    %v1014 = vmul.u32 %v1007, %v998
    %v1015 = vadd.s32 %v1010, %v1012
    %vm1016 = vc.u32 %v1010, %v1012
    %v1017 = vadd.s32 %v1013, 1
    %v1018 = vsel %vm1016, %v1017, %v1013
    %v1019 = vadd.s32 %v1014, %v1018
    %v1020 = vadd.s32 %v1019, 536870912
    %v1021 = vshrl.u32 %v1020, 30
    %v1022 = vshll.u32 %v1021, 30
    %v1023 = vsub.s32 %v1019, %v1022
    %vm1024 = vcmp.lt.s32.totalorder %v1023, 0
    %v1025 = vsub.s32 0, %v1023
    %v1026 = vsel %vm1024, %v1025, %v1023
    %v1027 = vclz %v1026
    %v1028 = vsub.s32 %v1027, 2
    %vm1029 = vcmp.gt.s32.totalorder 0, %v1028
    %v1030 = vsel %vm1029, 0, %v1028
    %v1031 = vsub.s32 32, %v1030
    %v1032 = vshll.u32 %v1023, %v1030
    %v1033 = vshrl.u32 %v1015, %v1031
    %v1034 = vor.u32 %v1032, %v1033
    %v1035 = vsub.s32 4294967266, %v1030
    %v1036 = vadd.s32 %v1035, 127
    %v1037 = vshll.u32 %v1036, 23
    %v1038 = vor.u32 4788187, %v1037
    %v1039 = vand.u32 2147483647, %v1038
    %v1041 = vcvt.s32.f32 %v1034
    %v1042 = vmul.f32 %v1041, %v1039
    %v1043 = vxor.u32 %v1042, 2147483648
    %v1044 = vsel %vm961, %v1043, %v1042
    %v1045 = vsub.s32 4, %v1021
    %v1046 = vsel %vm961, %v1045, %v1021
    %v1047 = vsel %vm960, %v231, %v1044
    %v1048 = vsel %vm960, 0, %v1046
    %v1049 = vcosq.f32.pop %v1047
    %v1050 = vsinq.f32.pop %v1047
    %vm1051 = vweird.f32 %v231
    %v1052 = vand.u32 %v1048, 3
    %vm1053 = vcmp.lt.s32.totalorder %v1052, 2
    %vm1054 = vcmp.eq.s32.totalorder %v1052, 0
    %v1055 = vxor.u32 %v1050, 2147483648
    %v1056 = vsel %vm1054, %v1049, %v1055
    %vm1057 = vcmp.eq.s32.totalorder %v1052, 2
    %v1058 = vxor.u32 %v1049, 2147483648
    %v1059 = vsel %vm1057, %v1058, %v1050
    %v1060 = vsel %vm1053, %v1056, %v1059
    %v1061 = vsel %vm1051, nan, %v1060
    %v1062 = vld [vmem:[%s2] sm:$0xff]
    %v1063 = vld [vmem:[%s2 + $0x8] sm:$0xff]
    %v1064 = vld [vmem:[%s2 + $0x10] sm:$0xff]
    %v1065 = vld [vmem:[%s2 + $0x18] sm:$0xff]
    %v1066 = vld [vmem:[%s3] sm:$0xff]
    %v1067 = vld [vmem:[%s3 + $0x8] sm:$0xff]
    %v1068 = vld [vmem:[%s3 + $0x10] sm:$0xff]
    %v1069 = vld [vmem:[%s3 + $0x18] sm:$0xff]
    %1071 = vset.pattern.permute.xlu0 0
    %1072 = vperm.xlu0 %1071, %v1066
    %v1073 = vpop.permute.xlu0 %1072
    %1076 = vset.pattern.permute.xlu0 0
    %1077 = vperm.xlu0 %1076, %v1067
    %v1078 = vpop.permute.xlu0 %1077
    %1081 = vset.pattern.permute.xlu0 0
    %1082 = vperm.xlu0 %1081, %v1068
    %v1083 = vpop.permute.xlu0 %1082
    %1086 = vset.pattern.permute.xlu0 0
    %1087 = vperm.xlu0 %1086, %v1069
    %v1088 = vpop.permute.xlu0 %1087
    %v1091 = vsel %vm132, %v1062, 0
    %v1094 = vsel %vm132, %v1063, 0
    %v1097 = vsel %vm132, %v1064, 0
    %v1100 = vsel %vm132, %v1065, 0
    %1102 = vmatprep.subr.mxu0 0.0
    %1103 = vmatpush1.msra.mxu0 %v147
    %1104 = vmatprep.subr.mxu0 0.0
    %1105 = vmatpush1.msra.mxu0 0.0
    %1106 = vmatprep.subr.mxu0 0.0
    %1107 = vmatpush1.msra.mxu0 0.0
    %1108 = vmatprep.subr.mxu0 0.0
    %1109 = vmatpush1.msra.mxu0 0.0
    %1110 = vmatprep.subr.mxu0 0.0
    %1111 = vmatpush1.msra.mxu0 0.0
    %1112 = vmatprep.subr.mxu0 0.0
    %1113 = vmatpush1.msra.mxu0 0.0
    %1114 = vmatprep.subr.mxu0 0.0
    %1115 = vmatpush1.msra.mxu0 0.0
    %1116 = vmatprep.subr.mxu0 0.0
    %1117 = vmatpush1.msra.mxu0 0.0
    %1118 = vmatprep.subr.mxu0 0.0
    %1119 = vmatpush1.msra.mxu0 0.0
    %1120 = vmatprep.subr.mxu0 0.0
    %1121 = vmatpush1.msra.mxu0 0.0
    %1122 = vmatprep.subr.mxu0 0.0
    %1123 = vmatpush1.msra.mxu0 0.0
    %1124 = vmatprep.subr.mxu0 0.0
    %1125 = vmatpush1.msra.mxu0 0.0
    %1126 = vmatprep.subr.mxu0 0.0
    %1127 = vmatpush1.msra.mxu0 0.0
    %1128 = vmatprep.subr.mxu0 0.0
    %1129 = vmatpush1.msra.mxu0 0.0
    %1130 = vmatprep.subr.mxu0 0.0
    %1131 = vmatpush1.msra.mxu0 0.0
    %1132 = vmatprep.subr.mxu0 0.0
    %1133 = vmatpush1.msra.mxu0 0.0
    %1134 = vmatprep.subr.mxu0 0.0
    %1135 = vmatpush1.msra.mxu0 0.0
    %1136 = vmatprep.subr.mxu0 0.0
    %1137 = vmatpush1.msra.mxu0 0.0
    %1138 = vmatprep.subr.mxu0 0.0
    %1139 = vmatpush1.msra.mxu0 0.0
    %1140 = vmatprep.subr.mxu0 0.0
    %1141 = vmatpush1.msra.mxu0 0.0
    %1142 = vmatprep.subr.mxu0 0.0
    %1143 = vmatpush1.msra.mxu0 0.0
    %1144 = vmatprep.subr.mxu0 0.0
    %1145 = vmatpush1.msra.mxu0 0.0
    %1146 = vmatprep.subr.mxu0 0.0
    %1147 = vmatpush1.msra.mxu0 0.0
    %1148 = vmatprep.subr.mxu0 0.0
    %1149 = vmatpush1.msra.mxu0 0.0
    %1150 = vmatprep.subr.mxu0 0.0
    %1151 = vmatpush1.msra.mxu0 0.0
    %1152 = vmatprep.subr.mxu0 0.0
    %1153 = vmatpush1.msra.mxu0 0.0
    %1154 = vmatprep.subr.mxu0 0.0
    %1155 = vmatpush1.msra.mxu0 0.0
    %1156 = vmatprep.subr.mxu0 0.0
    %1157 = vmatpush1.msra.mxu0 0.0
    %1158 = vmatprep.subr.mxu0 0.0
    %1159 = vmatpush1.msra.mxu0 0.0
    %1160 = vmatprep.subr.mxu0 0.0
    %1161 = vmatpush1.msra.mxu0 0.0
    %1162 = vmatprep.subr.mxu0 0.0
    %1163 = vmatpush1.msra.mxu0 0.0
    %1164 = vmatprep.subr.mxu0 0.0
    %1165 = vmatpush1.msra.mxu0 0.0
    %1166 = vmatprep.mubr.f32.mxu0 0.0
    %1167 = vmatmul.mubr.f32.gmra.mrb[0].mxu0 %v1091
    %v1168 = vpop.f32.mrb[0].mxu0
    %v1169 = vadd.f32 %v1073, %v1168
    %v1170 = vpop.f32.mrb[0].mxu0
    %1171 = vmatprep.mubr.f32.mxu0 0.0
    %1172 = vmatmul.mubr.f32.gmra.mrb[0].mxu0 %v1094
    %v1173 = vpop.f32.mrb[0].mxu0
    %v1174 = vadd.f32 %v1078, %v1173
    %v1175 = vpop.f32.mrb[0].mxu0
    %1176 = vmatprep.mubr.f32.mxu0 0.0
    %1177 = vmatmul.mubr.f32.gmra.mrb[0].mxu0 %v1097
    %v1178 = vpop.f32.mrb[0].mxu0
    %v1179 = vadd.f32 %v1083, %v1178
    %v1180 = vpop.f32.mrb[0].mxu0
    %1181 = vmatprep.mubr.f32.mxu0 0.0
    %1182 = vmatmul.mubr.f32.gmra.mrb[0].mxu0 %v1100
    %v1183 = vpop.f32.mrb[0].mxu0
    %v1184 = vadd.f32 %v1088, %v1183
    %v1185 = vpop.f32.mrb[0].mxu0
    %1186 = vdwg.mxu0
    %v1187 = vld [vmem:[%s4] sm:$0xff]
    %v1188 = vld [vmem:[%s4 + $0x8] sm:$0xff]
    %v1189 = vld [vmem:[%s4 + $0x10] sm:$0xff]
    %v1190 = vld [vmem:[%s4 + $0x18] sm:$0xff]
    %v1191 = vld [vmem:[%s4 + $0x20] sm:$0xff]
    %v1192 = vld [vmem:[%s4 + $0x28] sm:$0xff]
    %v1193 = vld [vmem:[%s4 + $0x30] sm:$0xff]
    %v1194 = vld [vmem:[%s4 + $0x38] sm:$0xff]
    %v1195 = vld [vmem:[%s4 + $0x40] sm:$0xff]
    %v1196 = vld [vmem:[%s4 + $0x48] sm:$0xff]
    %v1197 = vld [vmem:[%s4 + $0x50] sm:$0xff]
    %v1198 = vld [vmem:[%s4 + $0x58] sm:$0xff]
    %v1199 = vld [vmem:[%s4 + $0x60] sm:$0xff]
    %v1200 = vld [vmem:[%s4 + $0x68] sm:$0xff]
    %v1201 = vld [vmem:[%s4 + $0x70] sm:$0xff]
    %v1202 = vld [vmem:[%s4 + $0x78] sm:$0xff]
    %v1203 = vld [vmem:[%s5] sm:$0xff]
    %v1204 = vld [vmem:[%s5 + $0x8] sm:$0xff]
    %v1205 = vld [vmem:[%s5 + $0x10] sm:$0xff]
    %v1206 = vld [vmem:[%s5 + $0x18] sm:$0xff]
    %v1207 = vld [vmem:[%s5 + $0x20] sm:$0xff]
    %v1208 = vld [vmem:[%s5 + $0x28] sm:$0xff]
    %v1209 = vld [vmem:[%s5 + $0x30] sm:$0xff]
    %v1210 = vld [vmem:[%s5 + $0x38] sm:$0xff]
    %v1211 = vld [vmem:[%s5 + $0x40] sm:$0xff]
    %v1212 = vld [vmem:[%s5 + $0x48] sm:$0xff]
    %v1213 = vld [vmem:[%s5 + $0x50] sm:$0xff]
    %v1214 = vld [vmem:[%s5 + $0x58] sm:$0xff]
    %v1215 = vld [vmem:[%s5 + $0x60] sm:$0xff]
    %v1216 = vld [vmem:[%s5 + $0x68] sm:$0xff]
    %v1217 = vld [vmem:[%s5 + $0x70] sm:$0xff]
    %v1218 = vld [vmem:[%s5 + $0x78] sm:$0xff]
    %vm1219 = vcmask 261120
    %v1221 = vsel %vm1219, %v1203, 0
    %v1224 = vsel %vm1219, %v1204, 0
    %v1227 = vsel %vm1219, %v1205, 0
    %v1230 = vsel %vm1219, %v1206, 0
    %v1233 = vsel %vm1219, %v1207, 0
    %v1236 = vsel %vm1219, %v1208, 0
    %v1239 = vsel %vm1219, %v1209, 0
    %v1242 = vsel %vm1219, %v1210, 0
    %v1245 = vsel %vm1219, %v1211, 0
    %v1248 = vsel %vm1219, %v1212, 0
    %v1251 = vsel %vm1219, %v1213, 0
    %v1254 = vsel %vm1219, %v1214, 0
    %v1257 = vsel %vm1219, %v1215, 0
    %v1260 = vsel %vm1219, %v1216, 0
    %v1263 = vsel %vm1219, %v1217, 0
    %v1266 = vsel %vm1219, %v1218, 0
    %1268 = vmatprep.subr.mxu0 0.0
    %1269 = vmatpush1.msra.mxu0 %v337
    %1270 = vmatprep.subr.mxu0 0.0
    %1271 = vmatpush1.msra.mxu0 %v441
    %1272 = vmatprep.subr.mxu0 0.0
    %1273 = vmatpush1.msra.mxu0 %v545
    %1274 = vmatprep.subr.mxu0 0.0
    %1275 = vmatpush1.msra.mxu0 %v649
    %1276 = vmatprep.subr.mxu0 0.0
    %1277 = vmatpush1.msra.mxu0 0.0
    %1278 = vmatprep.subr.mxu0 0.0
    %1279 = vmatpush1.msra.mxu0 0.0
    %1280 = vmatprep.subr.mxu0 0.0
    %1281 = vmatpush1.msra.mxu0 0.0
    %1282 = vmatprep.subr.mxu0 0.0
    %1283 = vmatpush1.msra.mxu0 0.0
    %1284 = vmatprep.subr.mxu0 0.0
    %1285 = vmatpush1.msra.mxu0 0.0
    %1286 = vmatprep.subr.mxu0 0.0
    %1287 = vmatpush1.msra.mxu0 0.0
    %1288 = vmatprep.subr.mxu0 0.0
    %1289 = vmatpush1.msra.mxu0 0.0
    %1290 = vmatprep.subr.mxu0 0.0
    %1291 = vmatpush1.msra.mxu0 0.0
    %1292 = vmatprep.subr.mxu0 0.0
    %1293 = vmatpush1.msra.mxu0 0.0
    %1294 = vmatprep.subr.mxu0 0.0
    %1295 = vmatpush1.msra.mxu0 0.0
    %1296 = vmatprep.subr.mxu0 0.0
    %1297 = vmatpush1.msra.mxu0 0.0
    %1298 = vmatprep.subr.mxu0 0.0
    %1299 = vmatpush1.msra.mxu0 0.0
    %1300 = vmatprep.subr.mxu0 0.0
    %1301 = vmatpush1.msra.mxu0 0.0
    %1302 = vmatprep.subr.mxu0 0.0
    %1303 = vmatpush1.msra.mxu0 0.0
    %1304 = vmatprep.subr.mxu0 0.0
    %1305 = vmatpush1.msra.mxu0 0.0
    %1306 = vmatprep.subr.mxu0 0.0
    %1307 = vmatpush1.msra.mxu0 0.0
    %1308 = vmatprep.subr.mxu0 0.0
    %1309 = vmatpush1.msra.mxu0 0.0
    %1310 = vmatprep.subr.mxu0 0.0
    %1311 = vmatpush1.msra.mxu0 0.0
    %1312 = vmatprep.subr.mxu0 0.0
    %1313 = vmatpush1.msra.mxu0 0.0
    %1314 = vmatprep.subr.mxu0 0.0
    %1315 = vmatpush1.msra.mxu0 0.0
    %1316 = vmatprep.subr.mxu0 0.0
    %1317 = vmatpush1.msra.mxu0 0.0
    %1318 = vmatprep.subr.mxu0 0.0
    %1319 = vmatpush1.msra.mxu0 0.0
    %1320 = vmatprep.subr.mxu0 0.0
    %1321 = vmatpush1.msra.mxu0 0.0
    %1322 = vmatprep.subr.mxu0 0.0
    %1323 = vmatpush1.msra.mxu0 0.0
    %1324 = vmatprep.subr.mxu0 0.0
    %1325 = vmatpush1.msra.mxu0 0.0
    %1326 = vmatprep.subr.mxu0 0.0
    %1327 = vmatpush1.msra.mxu0 0.0
    %1328 = vmatprep.subr.mxu0 0.0
    %1329 = vmatpush1.msra.mxu0 0.0
    %1330 = vmatprep.subr.mxu0 0.0
    %1331 = vmatpush1.msra.mxu0 0.0
    %1332 = vmatprep.mubr.f32.mxu0 0.0
    %1333 = vmatmul.mubr.f32.gmra.mrb[0].mxu0 %v1221
    %v1334 = vpop.f32.mrb[0].mxu0
    %v1335 = vadd.f32 0.0, %v1334
    %v1336 = vpop.f32.mrb[0].mxu0
    %1337 = vmatprep.mubr.f32.mxu0 0.0
    %1338 = vmatmul.mubr.f32.gmra.mrb[0].mxu0 %v1224
    %v1339 = vpop.f32.mrb[0].mxu0
    %v1340 = vadd.f32 0.0, %v1339
    %v1341 = vpop.f32.mrb[0].mxu0
    %1342 = vmatprep.mubr.f32.mxu0 0.0
    %1343 = vmatmul.mubr.f32.gmra.mrb[0].mxu0 %v1227
    %v1344 = vpop.f32.mrb[0].mxu0
    %v1345 = vadd.f32 0.0, %v1344
    %v1346 = vpop.f32.mrb[0].mxu0
    %1347 = vmatprep.mubr.f32.mxu0 0.0
    %1348 = vmatmul.mubr.f32.gmra.mrb[0].mxu0 %v1230
    %v1349 = vpop.f32.mrb[0].mxu0
    %v1350 = vadd.f32 0.0, %v1349
    %v1351 = vpop.f32.mrb[0].mxu0
    %1352 = vmatprep.mubr.f32.mxu0 0.0
    %1353 = vmatmul.mubr.f32.gmra.mrb[0].mxu0 %v1233
    %v1354 = vpop.f32.mrb[0].mxu0
    %v1355 = vadd.f32 0.0, %v1354
    %v1356 = vpop.f32.mrb[0].mxu0
    %1357 = vmatprep.mubr.f32.mxu0 0.0
    %1358 = vmatmul.mubr.f32.gmra.mrb[0].mxu0 %v1236
    %v1359 = vpop.f32.mrb[0].mxu0
    %v1360 = vadd.f32 0.0, %v1359
    %v1361 = vpop.f32.mrb[0].mxu0
    %1362 = vmatprep.mubr.f32.mxu0 0.0
    %1363 = vmatmul.mubr.f32.gmra.mrb[0].mxu0 %v1239
    %v1364 = vpop.f32.mrb[0].mxu0
    %v1365 = vadd.f32 0.0, %v1364
    %v1366 = vpop.f32.mrb[0].mxu0
    %1367 = vmatprep.mubr.f32.mxu0 0.0
    %1368 = vmatmul.mubr.f32.gmra.mrb[0].mxu0 %v1242
    %v1369 = vpop.f32.mrb[0].mxu0
    %v1370 = vadd.f32 0.0, %v1369
    %v1371 = vpop.f32.mrb[0].mxu0
    %1372 = vmatprep.mubr.f32.mxu0 0.0
    %1373 = vmatmul.mubr.f32.gmra.mrb[0].mxu0 %v1245
    %v1374 = vpop.f32.mrb[0].mxu0
    %v1375 = vadd.f32 0.0, %v1374
    %v1376 = vpop.f32.mrb[0].mxu0
    %1377 = vmatprep.mubr.f32.mxu0 0.0
    %1378 = vmatmul.mubr.f32.gmra.mrb[0].mxu0 %v1248
    %v1379 = vpop.f32.mrb[0].mxu0
    %v1380 = vadd.f32 0.0, %v1379
    %v1381 = vpop.f32.mrb[0].mxu0
    %1382 = vmatprep.mubr.f32.mxu0 0.0
    %1383 = vmatmul.mubr.f32.gmra.mrb[0].mxu0 %v1251
    %v1384 = vpop.f32.mrb[0].mxu0
    %v1385 = vadd.f32 0.0, %v1384
    %v1386 = vpop.f32.mrb[0].mxu0
    %1387 = vmatprep.mubr.f32.mxu0 0.0
    %1388 = vmatmul.mubr.f32.gmra.mrb[0].mxu0 %v1254
    %v1389 = vpop.f32.mrb[0].mxu0
    %v1390 = vadd.f32 0.0, %v1389
    %v1391 = vpop.f32.mrb[0].mxu0
    %1392 = vmatprep.mubr.f32.mxu0 0.0
    %1393 = vmatmul.mubr.f32.gmra.mrb[0].mxu0 %v1257
    %v1394 = vpop.f32.mrb[0].mxu0
    %v1395 = vadd.f32 0.0, %v1394
    %v1396 = vpop.f32.mrb[0].mxu0
    %1397 = vmatprep.mubr.f32.mxu0 0.0
    %1398 = vmatmul.mubr.f32.gmra.mrb[0].mxu0 %v1260
    %v1399 = vpop.f32.mrb[0].mxu0
    %v1400 = vadd.f32 0.0, %v1399
    %v1401 = vpop.f32.mrb[0].mxu0
    %1402 = vmatprep.mubr.f32.mxu0 0.0
    %1403 = vmatmul.mubr.f32.gmra.mrb[0].mxu0 %v1263
    %v1404 = vpop.f32.mrb[0].mxu0
    %v1405 = vadd.f32 0.0, %v1404
    %v1406 = vpop.f32.mrb[0].mxu0
    %1407 = vmatprep.mubr.f32.mxu0 0.0
    %1408 = vmatmul.mubr.f32.gmra.mrb[0].mxu0 %v1266
    %v1409 = vpop.f32.mrb[0].mxu0
    %v1410 = vadd.f32 0.0, %v1409
    %v1411 = vpop.f32.mrb[0].mxu0
    %1412 = vdwg.mxu0
    %v1414 = vsel %vm1219, %v1187, 0
    %v1417 = vsel %vm1219, %v1188, 0
    %v1420 = vsel %vm1219, %v1189, 0
    %v1423 = vsel %vm1219, %v1190, 0
    %v1426 = vsel %vm1219, %v1191, 0
    %v1429 = vsel %vm1219, %v1192, 0
    %v1432 = vsel %vm1219, %v1193, 0
    %v1435 = vsel %vm1219, %v1194, 0
    %v1438 = vsel %vm1219, %v1195, 0
    %v1441 = vsel %vm1219, %v1196, 0
    %v1444 = vsel %vm1219, %v1197, 0
    %v1447 = vsel %vm1219, %v1198, 0
    %v1450 = vsel %vm1219, %v1199, 0
    %v1453 = vsel %vm1219, %v1200, 0
    %v1456 = vsel %vm1219, %v1201, 0
    %v1459 = vsel %vm1219, %v1202, 0
    %1461 = vmatprep.subr.mxu0 0.0
    %1462 = vmatpush1.msra.mxu0 %v1169
    %1463 = vmatprep.subr.mxu0 0.0
    %1464 = vmatpush1.msra.mxu0 %v1174
    %1465 = vmatprep.subr.mxu0 0.0
    %1466 = vmatpush1.msra.mxu0 %v1179
    %1467 = vmatprep.subr.mxu0 0.0
    %1468 = vmatpush1.msra.mxu0 %v1184
    %1469 = vmatprep.subr.mxu0 0.0
    %1470 = vmatpush1.msra.mxu0 0.0
    %1471 = vmatprep.subr.mxu0 0.0
    %1472 = vmatpush1.msra.mxu0 0.0
    %1473 = vmatprep.subr.mxu0 0.0
    %1474 = vmatpush1.msra.mxu0 0.0
    %1475 = vmatprep.subr.mxu0 0.0
    %1476 = vmatpush1.msra.mxu0 0.0
    %1477 = vmatprep.subr.mxu0 0.0
    %1478 = vmatpush1.msra.mxu0 0.0
    %1479 = vmatprep.subr.mxu0 0.0
    %1480 = vmatpush1.msra.mxu0 0.0
    %1481 = vmatprep.subr.mxu0 0.0
    %1482 = vmatpush1.msra.mxu0 0.0
    %1483 = vmatprep.subr.mxu0 0.0
    %1484 = vmatpush1.msra.mxu0 0.0
    %1485 = vmatprep.subr.mxu0 0.0
    %1486 = vmatpush1.msra.mxu0 0.0
    %1487 = vmatprep.subr.mxu0 0.0
    %1488 = vmatpush1.msra.mxu0 0.0
    %1489 = vmatprep.subr.mxu0 0.0
    %1490 = vmatpush1.msra.mxu0 0.0
    %1491 = vmatprep.subr.mxu0 0.0
    %1492 = vmatpush1.msra.mxu0 0.0
    %1493 = vmatprep.subr.mxu0 0.0
    %1494 = vmatpush1.msra.mxu0 0.0
    %1495 = vmatprep.subr.mxu0 0.0
    %1496 = vmatpush1.msra.mxu0 0.0
    %1497 = vmatprep.subr.mxu0 0.0
    %1498 = vmatpush1.msra.mxu0 0.0
    %1499 = vmatprep.subr.mxu0 0.0
    %1500 = vmatpush1.msra.mxu0 0.0
    %1501 = vmatprep.subr.mxu0 0.0
    %1502 = vmatpush1.msra.mxu0 0.0
    %1503 = vmatprep.subr.mxu0 0.0
    %1504 = vmatpush1.msra.mxu0 0.0
    %1505 = vmatprep.subr.mxu0 0.0
    %1506 = vmatpush1.msra.mxu0 0.0
    %1507 = vmatprep.subr.mxu0 0.0
    %1508 = vmatpush1.msra.mxu0 0.0
    %1509 = vmatprep.subr.mxu0 0.0
    %1510 = vmatpush1.msra.mxu0 0.0
    %1511 = vmatprep.subr.mxu0 0.0
    %1512 = vmatpush1.msra.mxu0 0.0
    %1513 = vmatprep.subr.mxu0 0.0
    %1514 = vmatpush1.msra.mxu0 0.0
    %1515 = vmatprep.subr.mxu0 0.0
    %1516 = vmatpush1.msra.mxu0 0.0
    %1517 = vmatprep.subr.mxu0 0.0
    %1518 = vmatpush1.msra.mxu0 0.0
    %1519 = vmatprep.subr.mxu0 0.0
    %1520 = vmatpush1.msra.mxu0 0.0
    %1521 = vmatprep.subr.mxu0 0.0
    %1522 = vmatpush1.msra.mxu0 0.0
    %1523 = vmatprep.subr.mxu0 0.0
    %1524 = vmatpush1.msra.mxu0 0.0
    %1525 = vmatprep.mubr.f32.mxu0 0.0
    %1526 = vmatmul.mubr.f32.gmra.mrb[0].mxu0 %v1414
    %v1527 = vpop.f32.mrb[0].mxu0
    %v1528 = vadd.f32 %v1335, %v1527
    %v1529 = vpop.f32.mrb[0].mxu0
    %1530 = vmatprep.mubr.f32.mxu0 0.0
    %1531 = vmatmul.mubr.f32.gmra.mrb[0].mxu0 %v1417
    %v1532 = vpop.f32.mrb[0].mxu0
    %v1533 = vadd.f32 %v1340, %v1532
    %v1534 = vpop.f32.mrb[0].mxu0
    %1535 = vmatprep.mubr.f32.mxu0 0.0
    %1536 = vmatmul.mubr.f32.gmra.mrb[0].mxu0 %v1420
    %v1537 = vpop.f32.mrb[0].mxu0
    %v1538 = vadd.f32 %v1345, %v1537
    %v1539 = vpop.f32.mrb[0].mxu0
    %1540 = vmatprep.mubr.f32.mxu0 0.0
    %1541 = vmatmul.mubr.f32.gmra.mrb[0].mxu0 %v1423
    %v1542 = vpop.f32.mrb[0].mxu0
    %v1543 = vadd.f32 %v1350, %v1542
    %v1544 = vpop.f32.mrb[0].mxu0
    %1545 = vmatprep.mubr.f32.mxu0 0.0
    %1546 = vmatmul.mubr.f32.gmra.mrb[0].mxu0 %v1426
    %v1547 = vpop.f32.mrb[0].mxu0
    %v1548 = vadd.f32 %v1355, %v1547
    %v1549 = vpop.f32.mrb[0].mxu0
    %1550 = vmatprep.mubr.f32.mxu0 0.0
    %1551 = vmatmul.mubr.f32.gmra.mrb[0].mxu0 %v1429
    %v1552 = vpop.f32.mrb[0].mxu0
    %v1553 = vadd.f32 %v1360, %v1552
    %v1554 = vpop.f32.mrb[0].mxu0
    %1555 = vmatprep.mubr.f32.mxu0 0.0
    %1556 = vmatmul.mubr.f32.gmra.mrb[0].mxu0 %v1432
    %v1557 = vpop.f32.mrb[0].mxu0
    %v1558 = vadd.f32 %v1365, %v1557
    %v1559 = vpop.f32.mrb[0].mxu0
    %1560 = vmatprep.mubr.f32.mxu0 0.0
    %1561 = vmatmul.mubr.f32.gmra.mrb[0].mxu0 %v1435
    %v1562 = vpop.f32.mrb[0].mxu0
    %v1563 = vadd.f32 %v1370, %v1562
    %v1564 = vpop.f32.mrb[0].mxu0
    %1565 = vmatprep.mubr.f32.mxu0 0.0
    %1566 = vmatmul.mubr.f32.gmra.mrb[0].mxu0 %v1438
    %v1567 = vpop.f32.mrb[0].mxu0
    %v1568 = vadd.f32 %v1375, %v1567
    %v1569 = vpop.f32.mrb[0].mxu0
    %1570 = vmatprep.mubr.f32.mxu0 0.0
    %1571 = vmatmul.mubr.f32.gmra.mrb[0].mxu0 %v1441
    %v1572 = vpop.f32.mrb[0].mxu0
    %v1573 = vadd.f32 %v1380, %v1572
    %v1574 = vpop.f32.mrb[0].mxu0
    %1575 = vmatprep.mubr.f32.mxu0 0.0
    %1576 = vmatmul.mubr.f32.gmra.mrb[0].mxu0 %v1444
    %v1577 = vpop.f32.mrb[0].mxu0
    %v1578 = vadd.f32 %v1385, %v1577
    %v1579 = vpop.f32.mrb[0].mxu0
    %1580 = vmatprep.mubr.f32.mxu0 0.0
    %1581 = vmatmul.mubr.f32.gmra.mrb[0].mxu0 %v1447
    %v1582 = vpop.f32.mrb[0].mxu0
    %v1583 = vadd.f32 %v1390, %v1582
    %v1584 = vpop.f32.mrb[0].mxu0
    %1585 = vmatprep.mubr.f32.mxu0 0.0
    %1586 = vmatmul.mubr.f32.gmra.mrb[0].mxu0 %v1450
    %v1587 = vpop.f32.mrb[0].mxu0
    %v1588 = vadd.f32 %v1395, %v1587
    %v1589 = vpop.f32.mrb[0].mxu0
    %1590 = vmatprep.mubr.f32.mxu0 0.0
    %1591 = vmatmul.mubr.f32.gmra.mrb[0].mxu0 %v1453
    %v1592 = vpop.f32.mrb[0].mxu0
    %v1593 = vadd.f32 %v1400, %v1592
    %v1594 = vpop.f32.mrb[0].mxu0
    %1595 = vmatprep.mubr.f32.mxu0 0.0
    %1596 = vmatmul.mubr.f32.gmra.mrb[0].mxu0 %v1456
    %v1597 = vpop.f32.mrb[0].mxu0
    %v1598 = vadd.f32 %v1405, %v1597
    %v1599 = vpop.f32.mrb[0].mxu0
    %1600 = vmatprep.mubr.f32.mxu0 0.0
    %1601 = vmatmul.mubr.f32.gmra.mrb[0].mxu0 %v1459
    %v1602 = vpop.f32.mrb[0].mxu0
    %v1603 = vadd.f32 %v1410, %v1602
    %v1604 = vpop.f32.mrb[0].mxu0
    %1605 = vdwg.mxu0
    %v1606 = vld [vmem:[%s6] sm:$0xff]
    %v1607 = vld [vmem:[%s6 + $0x8] sm:$0xff]
    %v1608 = vld [vmem:[%s6 + $0x10] sm:$0xff]
    %v1609 = vld [vmem:[%s6 + $0x18] sm:$0xff]
    %v1610 = vld [vmem:[%s6 + $0x20] sm:$0xff]
    %v1611 = vld [vmem:[%s6 + $0x28] sm:$0xff]
    %v1612 = vld [vmem:[%s6 + $0x30] sm:$0xff]
    %v1613 = vld [vmem:[%s6 + $0x38] sm:$0xff]
    %v1614 = vld [vmem:[%s6 + $0x40] sm:$0xff]
    %v1615 = vld [vmem:[%s6 + $0x48] sm:$0xff]
    %v1616 = vld [vmem:[%s6 + $0x50] sm:$0xff]
    %v1617 = vld [vmem:[%s6 + $0x58] sm:$0xff]
    %v1618 = vld [vmem:[%s6 + $0x60] sm:$0xff]
    %v1619 = vld [vmem:[%s6 + $0x68] sm:$0xff]
    %v1620 = vld [vmem:[%s6 + $0x70] sm:$0xff]
    %v1621 = vld [vmem:[%s6 + $0x78] sm:$0xff]
    %v1623 = vsel %vm1219, %v1606, 0
    %v1626 = vsel %vm1219, %v1607, 0
    %v1629 = vsel %vm1219, %v1608, 0
    %v1632 = vsel %vm1219, %v1609, 0
    %v1635 = vsel %vm1219, %v1610, 0
    %v1638 = vsel %vm1219, %v1611, 0
    %v1641 = vsel %vm1219, %v1612, 0
    %v1644 = vsel %vm1219, %v1613, 0
    %v1647 = vsel %vm1219, %v1614, 0
    %v1650 = vsel %vm1219, %v1615, 0
    %v1653 = vsel %vm1219, %v1616, 0
    %v1656 = vsel %vm1219, %v1617, 0
    %v1659 = vsel %vm1219, %v1618, 0
    %v1662 = vsel %vm1219, %v1619, 0
    %v1665 = vsel %vm1219, %v1620, 0
    %v1668 = vsel %vm1219, %v1621, 0
    %1670 = vmatprep.subr.mxu0 0.0
    %1671 = vmatpush1.msra.mxu0 %v752
    %1672 = vmatprep.subr.mxu0 0.0
    %1673 = vmatpush1.msra.mxu0 %v855
    %1674 = vmatprep.subr.mxu0 0.0
    %1675 = vmatpush1.msra.mxu0 %v958
    %1676 = vmatprep.subr.mxu0 0.0
    %1677 = vmatpush1.msra.mxu0 %v1061
    %1678 = vmatprep.subr.mxu0 0.0
    %1679 = vmatpush1.msra.mxu0 0.0
    %1680 = vmatprep.subr.mxu0 0.0
    %1681 = vmatpush1.msra.mxu0 0.0
    %1682 = vmatprep.subr.mxu0 0.0
    %1683 = vmatpush1.msra.mxu0 0.0
    %1684 = vmatprep.subr.mxu0 0.0
    %1685 = vmatpush1.msra.mxu0 0.0
    %1686 = vmatprep.subr.mxu0 0.0
    %1687 = vmatpush1.msra.mxu0 0.0
    %1688 = vmatprep.subr.mxu0 0.0
    %1689 = vmatpush1.msra.mxu0 0.0
    %1690 = vmatprep.subr.mxu0 0.0
    %1691 = vmatpush1.msra.mxu0 0.0
    %1692 = vmatprep.subr.mxu0 0.0
    %1693 = vmatpush1.msra.mxu0 0.0
    %1694 = vmatprep.subr.mxu0 0.0
    %1695 = vmatpush1.msra.mxu0 0.0
    %1696 = vmatprep.subr.mxu0 0.0
    %1697 = vmatpush1.msra.mxu0 0.0
    %1698 = vmatprep.subr.mxu0 0.0
    %1699 = vmatpush1.msra.mxu0 0.0
    %1700 = vmatprep.subr.mxu0 0.0
    %1701 = vmatpush1.msra.mxu0 0.0
    %1702 = vmatprep.subr.mxu0 0.0
    %1703 = vmatpush1.msra.mxu0 0.0
    %1704 = vmatprep.subr.mxu0 0.0
    %1705 = vmatpush1.msra.mxu0 0.0
    %1706 = vmatprep.subr.mxu0 0.0
    %1707 = vmatpush1.msra.mxu0 0.0
    %1708 = vmatprep.subr.mxu0 0.0
    %1709 = vmatpush1.msra.mxu0 0.0
    %1710 = vmatprep.subr.mxu0 0.0
    %1711 = vmatpush1.msra.mxu0 0.0
    %1712 = vmatprep.subr.mxu0 0.0
    %1713 = vmatpush1.msra.mxu0 0.0
    %1714 = vmatprep.subr.mxu0 0.0
    %1715 = vmatpush1.msra.mxu0 0.0
    %1716 = vmatprep.subr.mxu0 0.0
    %1717 = vmatpush1.msra.mxu0 0.0
    %1718 = vmatprep.subr.mxu0 0.0
    %1719 = vmatpush1.msra.mxu0 0.0
    %1720 = vmatprep.subr.mxu0 0.0
    %1721 = vmatpush1.msra.mxu0 0.0
    %1722 = vmatprep.subr.mxu0 0.0
    %1723 = vmatpush1.msra.mxu0 0.0
    %1724 = vmatprep.subr.mxu0 0.0
    %1725 = vmatpush1.msra.mxu0 0.0
    %1726 = vmatprep.subr.mxu0 0.0
    %1727 = vmatpush1.msra.mxu0 0.0
    %1728 = vmatprep.subr.mxu0 0.0
    %1729 = vmatpush1.msra.mxu0 0.0
    %1730 = vmatprep.subr.mxu0 0.0
    %1731 = vmatpush1.msra.mxu0 0.0
    %1732 = vmatprep.subr.mxu0 0.0
    %1733 = vmatpush1.msra.mxu0 0.0
    %1734 = vmatprep.mubr.f32.mxu0 0.0
    %1735 = vmatmul.mubr.f32.gmra.mrb[0].mxu0 %v1623
    %v1736 = vpop.f32.mrb[0].mxu0
    %v1737 = vadd.f32 0.0, %v1736
    %v1738 = vpop.f32.mrb[0].mxu0
    %1739 = vmatprep.mubr.f32.mxu0 0.0
    %1740 = vmatmul.mubr.f32.gmra.mrb[0].mxu0 %v1626
    %v1741 = vpop.f32.mrb[0].mxu0
    %v1742 = vadd.f32 0.0, %v1741
    %v1743 = vpop.f32.mrb[0].mxu0
    %1744 = vmatprep.mubr.f32.mxu0 0.0
    %1745 = vmatmul.mubr.f32.gmra.mrb[0].mxu0 %v1629
    %v1746 = vpop.f32.mrb[0].mxu0
    %v1747 = vadd.f32 0.0, %v1746
    %v1748 = vpop.f32.mrb[0].mxu0
    %1749 = vmatprep.mubr.f32.mxu0 0.0
    %1750 = vmatmul.mubr.f32.gmra.mrb[0].mxu0 %v1632
    %v1751 = vpop.f32.mrb[0].mxu0
    %v1752 = vadd.f32 0.0, %v1751
    %v1753 = vpop.f32.mrb[0].mxu0
    %1754 = vmatprep.mubr.f32.mxu0 0.0
    %1755 = vmatmul.mubr.f32.gmra.mrb[0].mxu0 %v1635
    %v1756 = vpop.f32.mrb[0].mxu0
    %v1757 = vadd.f32 0.0, %v1756
    %v1758 = vpop.f32.mrb[0].mxu0
    %1759 = vmatprep.mubr.f32.mxu0 0.0
    %1760 = vmatmul.mubr.f32.gmra.mrb[0].mxu0 %v1638
    %v1761 = vpop.f32.mrb[0].mxu0
    %v1762 = vadd.f32 0.0, %v1761
    %v1763 = vpop.f32.mrb[0].mxu0
    %1764 = vmatprep.mubr.f32.mxu0 0.0
    %1765 = vmatmul.mubr.f32.gmra.mrb[0].mxu0 %v1641
    %v1766 = vpop.f32.mrb[0].mxu0
    %v1767 = vadd.f32 0.0, %v1766
    %v1768 = vpop.f32.mrb[0].mxu0
    %1769 = vmatprep.mubr.f32.mxu0 0.0
    %1770 = vmatmul.mubr.f32.gmra.mrb[0].mxu0 %v1644
    %v1771 = vpop.f32.mrb[0].mxu0
    %v1772 = vadd.f32 0.0, %v1771
    %v1773 = vpop.f32.mrb[0].mxu0
    %1774 = vmatprep.mubr.f32.mxu0 0.0
    %1775 = vmatmul.mubr.f32.gmra.mrb[0].mxu0 %v1647
    %v1776 = vpop.f32.mrb[0].mxu0
    %v1777 = vadd.f32 0.0, %v1776
    %v1778 = vpop.f32.mrb[0].mxu0
    %1779 = vmatprep.mubr.f32.mxu0 0.0
    %1780 = vmatmul.mubr.f32.gmra.mrb[0].mxu0 %v1650
    %v1781 = vpop.f32.mrb[0].mxu0
    %v1782 = vadd.f32 0.0, %v1781
    %v1783 = vpop.f32.mrb[0].mxu0
    %1784 = vmatprep.mubr.f32.mxu0 0.0
    %1785 = vmatmul.mubr.f32.gmra.mrb[0].mxu0 %v1653
    %v1786 = vpop.f32.mrb[0].mxu0
    %v1787 = vadd.f32 0.0, %v1786
    %v1788 = vpop.f32.mrb[0].mxu0
    %1789 = vmatprep.mubr.f32.mxu0 0.0
    %1790 = vmatmul.mubr.f32.gmra.mrb[0].mxu0 %v1656
    %v1791 = vpop.f32.mrb[0].mxu0
    %v1792 = vadd.f32 0.0, %v1791
    %v1793 = vpop.f32.mrb[0].mxu0
    %1794 = vmatprep.mubr.f32.mxu0 0.0
    %1795 = vmatmul.mubr.f32.gmra.mrb[0].mxu0 %v1659
    %v1796 = vpop.f32.mrb[0].mxu0
    %v1797 = vadd.f32 0.0, %v1796
    %v1798 = vpop.f32.mrb[0].mxu0
    %1799 = vmatprep.mubr.f32.mxu0 0.0
    %1800 = vmatmul.mubr.f32.gmra.mrb[0].mxu0 %v1662
    %v1801 = vpop.f32.mrb[0].mxu0
    %v1802 = vadd.f32 0.0, %v1801
    %v1803 = vpop.f32.mrb[0].mxu0
    %1804 = vmatprep.mubr.f32.mxu0 0.0
    %1805 = vmatmul.mubr.f32.gmra.mrb[0].mxu0 %v1665
    %v1806 = vpop.f32.mrb[0].mxu0
    %v1807 = vadd.f32 0.0, %v1806
    %v1808 = vpop.f32.mrb[0].mxu0
    %1809 = vmatprep.mubr.f32.mxu0 0.0
    %1810 = vmatmul.mubr.f32.gmra.mrb[0].mxu0 %v1668
    %v1811 = vpop.f32.mrb[0].mxu0
    %v1812 = vadd.f32 0.0, %v1811
    %v1813 = vpop.f32.mrb[0].mxu0
    %1814 = vdwg.mxu0
    %v1815 = vadd.f32 %v1528, %v1737
    %v1816 = vadd.f32 %v1533, %v1742
    %v1817 = vadd.f32 %v1538, %v1747
    %v1818 = vadd.f32 %v1543, %v1752
    %v1819 = vadd.f32 %v1548, %v1757
    %v1820 = vadd.f32 %v1553, %v1762
    %v1821 = vadd.f32 %v1558, %v1767
    %v1822 = vadd.f32 %v1563, %v1772
    %v1823 = vadd.f32 %v1568, %v1777
    %v1824 = vadd.f32 %v1573, %v1782
    %v1825 = vadd.f32 %v1578, %v1787
    %v1826 = vadd.f32 %v1583, %v1792
    %v1827 = vadd.f32 %v1588, %v1797
    %v1828 = vadd.f32 %v1593, %v1802
    %v1829 = vadd.f32 %v1598, %v1807
    %v1830 = vadd.f32 %v1603, %v1812
    %v1831 = vld [vmem:[%s7] sm:$0xff]
    %v1832 = vld [vmem:[%s7 + $0x8] sm:$0xff]
    %v1833 = vld [vmem:[%s7 + $0x10] sm:$0xff]
    %v1834 = vld [vmem:[%s7 + $0x18] sm:$0xff]
    %v1835 = vld [vmem:[%s7 + $0x20] sm:$0xff]
    %v1836 = vld [vmem:[%s7 + $0x28] sm:$0xff]
    %v1837 = vld [vmem:[%s7 + $0x30] sm:$0xff]
    %v1838 = vld [vmem:[%s7 + $0x38] sm:$0xff]
    %v1839 = vld [vmem:[%s7 + $0x40] sm:$0xff]
    %v1840 = vld [vmem:[%s7 + $0x48] sm:$0xff]
    %v1841 = vld [vmem:[%s7 + $0x50] sm:$0xff]
    %v1842 = vld [vmem:[%s7 + $0x58] sm:$0xff]
    %v1843 = vld [vmem:[%s7 + $0x60] sm:$0xff]
    %v1844 = vld [vmem:[%s7 + $0x68] sm:$0xff]
    %v1845 = vld [vmem:[%s7 + $0x70] sm:$0xff]
    %v1846 = vld [vmem:[%s7 + $0x78] sm:$0xff]
    %1848 = vset.pattern.permute.xlu0 0
    %1849 = vperm.xlu0 %1848, %v1831
    %v1850 = vpop.permute.xlu0 %1849
    %1853 = vset.pattern.permute.xlu0 0
    %1854 = vperm.xlu0 %1853, %v1832
    %v1855 = vpop.permute.xlu0 %1854
    %1858 = vset.pattern.permute.xlu0 0
    %1859 = vperm.xlu0 %1858, %v1833
    %v1860 = vpop.permute.xlu0 %1859
    %1863 = vset.pattern.permute.xlu0 0
    %1864 = vperm.xlu0 %1863, %v1834
    %v1865 = vpop.permute.xlu0 %1864
    %1868 = vset.pattern.permute.xlu0 0
    %1869 = vperm.xlu0 %1868, %v1835
    %v1870 = vpop.permute.xlu0 %1869
    %1873 = vset.pattern.permute.xlu0 0
    %1874 = vperm.xlu0 %1873, %v1836
    %v1875 = vpop.permute.xlu0 %1874
    %1878 = vset.pattern.permute.xlu0 0
    %1879 = vperm.xlu0 %1878, %v1837
    %v1880 = vpop.permute.xlu0 %1879
    %1883 = vset.pattern.permute.xlu0 0
    %1884 = vperm.xlu0 %1883, %v1838
    %v1885 = vpop.permute.xlu0 %1884
    %1888 = vset.pattern.permute.xlu0 0
    %1889 = vperm.xlu0 %1888, %v1839
    %v1890 = vpop.permute.xlu0 %1889
    %1893 = vset.pattern.permute.xlu0 0
    %1894 = vperm.xlu0 %1893, %v1840
    %v1895 = vpop.permute.xlu0 %1894
    %1898 = vset.pattern.permute.xlu0 0
    %1899 = vperm.xlu0 %1898, %v1841
    %v1900 = vpop.permute.xlu0 %1899
    %1903 = vset.pattern.permute.xlu0 0
    %1904 = vperm.xlu0 %1903, %v1842
    %v1905 = vpop.permute.xlu0 %1904
    %1908 = vset.pattern.permute.xlu0 0
    %1909 = vperm.xlu0 %1908, %v1843
    %v1910 = vpop.permute.xlu0 %1909
    %1913 = vset.pattern.permute.xlu0 0
    %1914 = vperm.xlu0 %1913, %v1844
    %v1915 = vpop.permute.xlu0 %1914
    %1918 = vset.pattern.permute.xlu0 0
    %1919 = vperm.xlu0 %1918, %v1845
    %v1920 = vpop.permute.xlu0 %1919
    %1923 = vset.pattern.permute.xlu0 0
    %1924 = vperm.xlu0 %1923, %v1846
    %v1925 = vpop.permute.xlu0 %1924
    %v1927 = vadd.f32 %v1815, %v1850
    %v1928 = vadd.f32 %v1816, %v1855
    %v1929 = vadd.f32 %v1817, %v1860
    %v1930 = vadd.f32 %v1818, %v1865
    %v1931 = vadd.f32 %v1819, %v1870
    %v1932 = vadd.f32 %v1820, %v1875
    %v1933 = vadd.f32 %v1821, %v1880
    %v1934 = vadd.f32 %v1822, %v1885
    %v1935 = vadd.f32 %v1823, %v1890
    %v1936 = vadd.f32 %v1824, %v1895
    %v1937 = vadd.f32 %v1825, %v1900
    %v1938 = vadd.f32 %v1826, %v1905
    %v1939 = vadd.f32 %v1827, %v1910
    %v1940 = vadd.f32 %v1828, %v1915
    %v1941 = vadd.f32 %v1829, %v1920
    %v1942 = vadd.f32 %v1830, %v1925
    %v1943 = vld [vmem:[%s8] sm:$0xff]
    %v1944 = vld [vmem:[%s8 + $0x8] sm:$0xff]
    %v1945 = vld [vmem:[%s8 + $0x10] sm:$0xff]
    %v1946 = vld [vmem:[%s8 + $0x18] sm:$0xff]
    %v1947 = vld [vmem:[%s8 + $0x20] sm:$0xff]
    %v1948 = vld [vmem:[%s8 + $0x28] sm:$0xff]
    %v1949 = vld [vmem:[%s8 + $0x30] sm:$0xff]
    %v1950 = vld [vmem:[%s8 + $0x38] sm:$0xff]
    %v1951 = vld [vmem:[%s8 + $0x40] sm:$0xff]
    %v1952 = vld [vmem:[%s8 + $0x48] sm:$0xff]
    %v1953 = vld [vmem:[%s8 + $0x50] sm:$0xff]
    %v1954 = vld [vmem:[%s8 + $0x58] sm:$0xff]
    %v1955 = vld [vmem:[%s8 + $0x60] sm:$0xff]
    %v1956 = vld [vmem:[%s8 + $0x68] sm:$0xff]
    %v1957 = vld [vmem:[%s8 + $0x70] sm:$0xff]
    %v1958 = vld [vmem:[%s8 + $0x78] sm:$0xff]
    %v1959 = vld [vmem:[%s9] sm:$0xff]
    %v1960 = vld [vmem:[%s9 + $0x8] sm:$0xff]
    %v1961 = vld [vmem:[%s9 + $0x10] sm:$0xff]
    %v1962 = vld [vmem:[%s9 + $0x18] sm:$0xff]
    %v1963 = vld [vmem:[%s9 + $0x20] sm:$0xff]
    %v1964 = vld [vmem:[%s9 + $0x28] sm:$0xff]
    %v1965 = vld [vmem:[%s9 + $0x30] sm:$0xff]
    %v1966 = vld [vmem:[%s9 + $0x38] sm:$0xff]
    %v1967 = vld [vmem:[%s9 + $0x40] sm:$0xff]
    %v1968 = vld [vmem:[%s9 + $0x48] sm:$0xff]
    %v1969 = vld [vmem:[%s9 + $0x50] sm:$0xff]
    %v1970 = vld [vmem:[%s9 + $0x58] sm:$0xff]
    %v1971 = vld [vmem:[%s9 + $0x60] sm:$0xff]
    %v1972 = vld [vmem:[%s9 + $0x68] sm:$0xff]
    %v1973 = vld [vmem:[%s9 + $0x70] sm:$0xff]
    %v1974 = vld [vmem:[%s9 + $0x78] sm:$0xff]
    %1976 = vset.pattern.permute.xlu0 0
    %1977 = vperm.xlu0 %1976, %v1959
    %v1978 = vpop.permute.xlu0 %1977
    %1981 = vset.pattern.permute.xlu0 0
    %1982 = vperm.xlu0 %1981, %v1960
    %v1983 = vpop.permute.xlu0 %1982
    %1986 = vset.pattern.permute.xlu0 0
    %1987 = vperm.xlu0 %1986, %v1961
    %v1988 = vpop.permute.xlu0 %1987
    %1991 = vset.pattern.permute.xlu0 0
    %1992 = vperm.xlu0 %1991, %v1962
    %v1993 = vpop.permute.xlu0 %1992
    %1996 = vset.pattern.permute.xlu0 0
    %1997 = vperm.xlu0 %1996, %v1963
    %v1998 = vpop.permute.xlu0 %1997
    %2001 = vset.pattern.permute.xlu0 0
    %2002 = vperm.xlu0 %2001, %v1964
    %v2003 = vpop.permute.xlu0 %2002
    %2006 = vset.pattern.permute.xlu0 0
    %2007 = vperm.xlu0 %2006, %v1965
    %v2008 = vpop.permute.xlu0 %2007
    %2011 = vset.pattern.permute.xlu0 0
    %2012 = vperm.xlu0 %2011, %v1966
    %v2013 = vpop.permute.xlu0 %2012
    %2016 = vset.pattern.permute.xlu0 0
    %2017 = vperm.xlu0 %2016, %v1967
    %v2018 = vpop.permute.xlu0 %2017
    %2021 = vset.pattern.permute.xlu0 0
    %2022 = vperm.xlu0 %2021, %v1968
    %v2023 = vpop.permute.xlu0 %2022
    %2026 = vset.pattern.permute.xlu0 0
    %2027 = vperm.xlu0 %2026, %v1969
    %v2028 = vpop.permute.xlu0 %2027
    %2031 = vset.pattern.permute.xlu0 0
    %2032 = vperm.xlu0 %2031, %v1970
    %v2033 = vpop.permute.xlu0 %2032
    %2036 = vset.pattern.permute.xlu0 0
    %2037 = vperm.xlu0 %2036, %v1971
    %v2038 = vpop.permute.xlu0 %2037
    %2041 = vset.pattern.permute.xlu0 0
    %2042 = vperm.xlu0 %2041, %v1972
    %v2043 = vpop.permute.xlu0 %2042
    %2046 = vset.pattern.permute.xlu0 0
    %2047 = vperm.xlu0 %2046, %v1973
    %v2048 = vpop.permute.xlu0 %2047
    %2051 = vset.pattern.permute.xlu0 0
    %2052 = vperm.xlu0 %2051, %v1974
    %v2053 = vpop.permute.xlu0 %2052
    %2055 = vmatprep.subr.mxu0 0.0
    %2056 = vmatpush1.msra.mxu0 %v1927
    %2057 = vmatprep.subr.mxu0 0.0
    %2058 = vmatpush1.msra.mxu0 %v1928
    %2059 = vmatprep.subr.mxu0 0.0
    %2060 = vmatpush1.msra.mxu0 %v1929
    %2061 = vmatprep.subr.mxu0 0.0
    %2062 = vmatpush1.msra.mxu0 %v1930
    %2063 = vmatprep.subr.mxu0 0.0
    %2064 = vmatpush1.msra.mxu0 %v1931
    %2065 = vmatprep.subr.mxu0 0.0
    %2066 = vmatpush1.msra.mxu0 %v1932
    %2067 = vmatprep.subr.mxu0 0.0
    %2068 = vmatpush1.msra.mxu0 %v1933
    %2069 = vmatprep.subr.mxu0 0.0
    %2070 = vmatpush1.msra.mxu0 %v1934
    %2071 = vmatprep.subr.mxu0 0.0
    %2072 = vmatpush1.msra.mxu0 %v1935
    %2073 = vmatprep.subr.mxu0 0.0
    %2074 = vmatpush1.msra.mxu0 %v1936
    %2075 = vmatprep.subr.mxu0 0.0
    %2076 = vmatpush1.msra.mxu0 %v1937
    %2077 = vmatprep.subr.mxu0 0.0
    %2078 = vmatpush1.msra.mxu0 %v1938
    %2079 = vmatprep.subr.mxu0 0.0
    %2080 = vmatpush1.msra.mxu0 %v1939
    %2081 = vmatprep.subr.mxu0 0.0
    %2082 = vmatpush1.msra.mxu0 %v1940
    %2083 = vmatprep.subr.mxu0 0.0
    %2084 = vmatpush1.msra.mxu0 %v1941
    %2085 = vmatprep.subr.mxu0 0.0
    %2086 = vmatpush1.msra.mxu0 %v1942
    %2087 = vmatprep.subr.mxu0 0.0
    %2088 = vmatpush1.msra.mxu0 0.0
    %2089 = vmatprep.subr.mxu0 0.0
    %2090 = vmatpush1.msra.mxu0 0.0
    %2091 = vmatprep.subr.mxu0 0.0
    %2092 = vmatpush1.msra.mxu0 0.0
    %2093 = vmatprep.subr.mxu0 0.0
    %2094 = vmatpush1.msra.mxu0 0.0
    %2095 = vmatprep.subr.mxu0 0.0
    %2096 = vmatpush1.msra.mxu0 0.0
    %2097 = vmatprep.subr.mxu0 0.0
    %2098 = vmatpush1.msra.mxu0 0.0
    %2099 = vmatprep.subr.mxu0 0.0
    %2100 = vmatpush1.msra.mxu0 0.0
    %2101 = vmatprep.subr.mxu0 0.0
    %2102 = vmatpush1.msra.mxu0 0.0
    %2103 = vmatprep.subr.mxu0 0.0
    %2104 = vmatpush1.msra.mxu0 0.0
    %2105 = vmatprep.subr.mxu0 0.0
    %2106 = vmatpush1.msra.mxu0 0.0
    %2107 = vmatprep.subr.mxu0 0.0
    %2108 = vmatpush1.msra.mxu0 0.0
    %2109 = vmatprep.subr.mxu0 0.0
    %2110 = vmatpush1.msra.mxu0 0.0
    %2111 = vmatprep.subr.mxu0 0.0
    %2112 = vmatpush1.msra.mxu0 0.0
    %2113 = vmatprep.subr.mxu0 0.0
    %2114 = vmatpush1.msra.mxu0 0.0
    %2115 = vmatprep.subr.mxu0 0.0
    %2116 = vmatpush1.msra.mxu0 0.0
    %2117 = vmatprep.subr.mxu0 0.0
    %2118 = vmatpush1.msra.mxu0 0.0
    %2119 = vmatprep.mubr.f32.mxu0 0.0
    %2120 = vmatmul.mubr.f32.gmra.mrb[0].mxu0 %v1943
    %v2121 = vpop.f32.mrb[0].mxu0
    %v2122 = vadd.f32 %v1978, %v2121
    %v2123 = vpop.f32.mrb[0].mxu0
    %2124 = vmatprep.mubr.f32.mxu0 0.0
    %2125 = vmatmul.mubr.f32.gmra.mrb[0].mxu0 %v1944
    %v2126 = vpop.f32.mrb[0].mxu0
    %v2127 = vadd.f32 %v1983, %v2126
    %v2128 = vpop.f32.mrb[0].mxu0
    %2129 = vmatprep.mubr.f32.mxu0 0.0
    %2130 = vmatmul.mubr.f32.gmra.mrb[0].mxu0 %v1945
    %v2131 = vpop.f32.mrb[0].mxu0
    %v2132 = vadd.f32 %v1988, %v2131
    %v2133 = vpop.f32.mrb[0].mxu0
    %2134 = vmatprep.mubr.f32.mxu0 0.0
    %2135 = vmatmul.mubr.f32.gmra.mrb[0].mxu0 %v1946
    %v2136 = vpop.f32.mrb[0].mxu0
    %v2137 = vadd.f32 %v1993, %v2136
    %v2138 = vpop.f32.mrb[0].mxu0
    %2139 = vmatprep.mubr.f32.mxu0 0.0
    %2140 = vmatmul.mubr.f32.gmra.mrb[0].mxu0 %v1947
    %v2141 = vpop.f32.mrb[0].mxu0
    %v2142 = vadd.f32 %v1998, %v2141
    %v2143 = vpop.f32.mrb[0].mxu0
    %2144 = vmatprep.mubr.f32.mxu0 0.0
    %2145 = vmatmul.mubr.f32.gmra.mrb[0].mxu0 %v1948
    %v2146 = vpop.f32.mrb[0].mxu0
    %v2147 = vadd.f32 %v2003, %v2146
    %v2148 = vpop.f32.mrb[0].mxu0
    %2149 = vmatprep.mubr.f32.mxu0 0.0
    %2150 = vmatmul.mubr.f32.gmra.mrb[0].mxu0 %v1949
    %v2151 = vpop.f32.mrb[0].mxu0
    %v2152 = vadd.f32 %v2008, %v2151
    %v2153 = vpop.f32.mrb[0].mxu0
    %2154 = vmatprep.mubr.f32.mxu0 0.0
    %2155 = vmatmul.mubr.f32.gmra.mrb[0].mxu0 %v1950
    %v2156 = vpop.f32.mrb[0].mxu0
    %v2157 = vadd.f32 %v2013, %v2156
    %v2158 = vpop.f32.mrb[0].mxu0
    %2159 = vmatprep.mubr.f32.mxu0 0.0
    %2160 = vmatmul.mubr.f32.gmra.mrb[0].mxu0 %v1951
    %v2161 = vpop.f32.mrb[0].mxu0
    %v2162 = vadd.f32 %v2018, %v2161
    %v2163 = vpop.f32.mrb[0].mxu0
    %2164 = vmatprep.mubr.f32.mxu0 0.0
    %2165 = vmatmul.mubr.f32.gmra.mrb[0].mxu0 %v1952
    %v2166 = vpop.f32.mrb[0].mxu0
    %v2167 = vadd.f32 %v2023, %v2166
    %v2168 = vpop.f32.mrb[0].mxu0
    %2169 = vmatprep.mubr.f32.mxu0 0.0
    %2170 = vmatmul.mubr.f32.gmra.mrb[0].mxu0 %v1953
    %v2171 = vpop.f32.mrb[0].mxu0
    %v2172 = vadd.f32 %v2028, %v2171
    %v2173 = vpop.f32.mrb[0].mxu0
    %2174 = vmatprep.mubr.f32.mxu0 0.0
    %2175 = vmatmul.mubr.f32.gmra.mrb[0].mxu0 %v1954
    %v2176 = vpop.f32.mrb[0].mxu0
    %v2177 = vadd.f32 %v2033, %v2176
    %v2178 = vpop.f32.mrb[0].mxu0
    %2179 = vmatprep.mubr.f32.mxu0 0.0
    %2180 = vmatmul.mubr.f32.gmra.mrb[0].mxu0 %v1955
    %v2181 = vpop.f32.mrb[0].mxu0
    %v2182 = vadd.f32 %v2038, %v2181
    %v2183 = vpop.f32.mrb[0].mxu0
    %2184 = vmatprep.mubr.f32.mxu0 0.0
    %2185 = vmatmul.mubr.f32.gmra.mrb[0].mxu0 %v1956
    %v2186 = vpop.f32.mrb[0].mxu0
    %v2187 = vadd.f32 %v2043, %v2186
    %v2188 = vpop.f32.mrb[0].mxu0
    %2189 = vmatprep.mubr.f32.mxu0 0.0
    %2190 = vmatmul.mubr.f32.gmra.mrb[0].mxu0 %v1957
    %v2191 = vpop.f32.mrb[0].mxu0
    %v2192 = vadd.f32 %v2048, %v2191
    %v2193 = vpop.f32.mrb[0].mxu0
    %2194 = vmatprep.mubr.f32.mxu0 0.0
    %2195 = vmatmul.mubr.f32.gmra.mrb[0].mxu0 %v1958
    %v2196 = vpop.f32.mrb[0].mxu0
    %v2197 = vadd.f32 %v2053, %v2196
    %v2198 = vpop.f32.mrb[0].mxu0
    %2199 = vdwg.mxu0
    %v2200 = vtanh.pop %v2122
    %v2201 = vtanh.pop %v2127
    %v2202 = vtanh.pop %v2132
    %v2203 = vtanh.pop %v2137
    %v2204 = vtanh.pop %v2142
    %v2205 = vtanh.pop %v2147
    %v2206 = vtanh.pop %v2152
    %v2207 = vtanh.pop %v2157
    %v2208 = vtanh.pop %v2162
    %v2209 = vtanh.pop %v2167
    %v2210 = vtanh.pop %v2172
    %v2211 = vtanh.pop %v2177
    %v2212 = vtanh.pop %v2182
    %v2213 = vtanh.pop %v2187
    %v2214 = vtanh.pop %v2192
    %v2215 = vtanh.pop %v2197
    %v2216 = vld [vmem:[%s10] sm:$0xff]
    %v2217 = vld [vmem:[%s10 + $0x8] sm:$0xff]
    %v2218 = vld [vmem:[%s10 + $0x10] sm:$0xff]
    %v2219 = vld [vmem:[%s10 + $0x18] sm:$0xff]
    %v2220 = vld [vmem:[%s10 + $0x20] sm:$0xff]
    %v2221 = vld [vmem:[%s10 + $0x28] sm:$0xff]
    %v2222 = vld [vmem:[%s10 + $0x30] sm:$0xff]
    %v2223 = vld [vmem:[%s10 + $0x38] sm:$0xff]
    %v2224 = vld [vmem:[%s10 + $0x40] sm:$0xff]
    %v2225 = vld [vmem:[%s10 + $0x48] sm:$0xff]
    %v2226 = vld [vmem:[%s10 + $0x50] sm:$0xff]
    %v2227 = vld [vmem:[%s10 + $0x58] sm:$0xff]
    %v2228 = vld [vmem:[%s10 + $0x60] sm:$0xff]
    %v2229 = vld [vmem:[%s10 + $0x68] sm:$0xff]
    %v2230 = vld [vmem:[%s10 + $0x70] sm:$0xff]
    %v2231 = vld [vmem:[%s10 + $0x78] sm:$0xff]
    %v2232 = vld [vmem:[%s11] sm:$0xff]
    %v2233 = vld [vmem:[%s11 + $0x8] sm:$0xff]
    %v2234 = vld [vmem:[%s11 + $0x10] sm:$0xff]
    %v2235 = vld [vmem:[%s11 + $0x18] sm:$0xff]
    %v2236 = vld [vmem:[%s11 + $0x20] sm:$0xff]
    %v2237 = vld [vmem:[%s11 + $0x28] sm:$0xff]
    %v2238 = vld [vmem:[%s11 + $0x30] sm:$0xff]
    %v2239 = vld [vmem:[%s11 + $0x38] sm:$0xff]
    %v2240 = vld [vmem:[%s11 + $0x40] sm:$0xff]
    %v2241 = vld [vmem:[%s11 + $0x48] sm:$0xff]
    %v2242 = vld [vmem:[%s11 + $0x50] sm:$0xff]
    %v2243 = vld [vmem:[%s11 + $0x58] sm:$0xff]
    %v2244 = vld [vmem:[%s11 + $0x60] sm:$0xff]
    %v2245 = vld [vmem:[%s11 + $0x68] sm:$0xff]
    %v2246 = vld [vmem:[%s11 + $0x70] sm:$0xff]
    %v2247 = vld [vmem:[%s11 + $0x78] sm:$0xff]
    %2249 = vset.pattern.permute.xlu0 0
    %2250 = vperm.xlu0 %2249, %v2232
    %v2251 = vpop.permute.xlu0 %2250
    %2254 = vset.pattern.permute.xlu0 0
    %2255 = vperm.xlu0 %2254, %v2233
    %v2256 = vpop.permute.xlu0 %2255
    %2259 = vset.pattern.permute.xlu0 0
    %2260 = vperm.xlu0 %2259, %v2234
    %v2261 = vpop.permute.xlu0 %2260
    %2264 = vset.pattern.permute.xlu0 0
    %2265 = vperm.xlu0 %2264, %v2235
    %v2266 = vpop.permute.xlu0 %2265
    %2269 = vset.pattern.permute.xlu0 0
    %2270 = vperm.xlu0 %2269, %v2236
    %v2271 = vpop.permute.xlu0 %2270
    %2274 = vset.pattern.permute.xlu0 0
    %2275 = vperm.xlu0 %2274, %v2237
    %v2276 = vpop.permute.xlu0 %2275
    %2279 = vset.pattern.permute.xlu0 0
    %2280 = vperm.xlu0 %2279, %v2238
    %v2281 = vpop.permute.xlu0 %2280
    %2284 = vset.pattern.permute.xlu0 0
    %2285 = vperm.xlu0 %2284, %v2239
    %v2286 = vpop.permute.xlu0 %2285
    %2289 = vset.pattern.permute.xlu0 0
    %2290 = vperm.xlu0 %2289, %v2240
    %v2291 = vpop.permute.xlu0 %2290
    %2294 = vset.pattern.permute.xlu0 0
    %2295 = vperm.xlu0 %2294, %v2241
    %v2296 = vpop.permute.xlu0 %2295
    %2299 = vset.pattern.permute.xlu0 0
    %2300 = vperm.xlu0 %2299, %v2242
    %v2301 = vpop.permute.xlu0 %2300
    %2304 = vset.pattern.permute.xlu0 0
    %2305 = vperm.xlu0 %2304, %v2243
    %v2306 = vpop.permute.xlu0 %2305
    %2309 = vset.pattern.permute.xlu0 0
    %2310 = vperm.xlu0 %2309, %v2244
    %v2311 = vpop.permute.xlu0 %2310
    %2314 = vset.pattern.permute.xlu0 0
    %2315 = vperm.xlu0 %2314, %v2245
    %v2316 = vpop.permute.xlu0 %2315
    %2319 = vset.pattern.permute.xlu0 0
    %2320 = vperm.xlu0 %2319, %v2246
    %v2321 = vpop.permute.xlu0 %2320
    %2324 = vset.pattern.permute.xlu0 0
    %2325 = vperm.xlu0 %2324, %v2247
    %v2326 = vpop.permute.xlu0 %2325
    %2328 = vmatprep.subr.mxu0 0.0
    %2329 = vmatpush1.msra.mxu0 %v2200
    %2330 = vmatprep.subr.mxu0 0.0
    %2331 = vmatpush1.msra.mxu0 %v2201
    %2332 = vmatprep.subr.mxu0 0.0
    %2333 = vmatpush1.msra.mxu0 %v2202
    %2334 = vmatprep.subr.mxu0 0.0
    %2335 = vmatpush1.msra.mxu0 %v2203
    %2336 = vmatprep.subr.mxu0 0.0
    %2337 = vmatpush1.msra.mxu0 %v2204
    %2338 = vmatprep.subr.mxu0 0.0
    %2339 = vmatpush1.msra.mxu0 %v2205
    %2340 = vmatprep.subr.mxu0 0.0
    %2341 = vmatpush1.msra.mxu0 %v2206
    %2342 = vmatprep.subr.mxu0 0.0
    %2343 = vmatpush1.msra.mxu0 %v2207
    %2344 = vmatprep.subr.mxu0 0.0
    %2345 = vmatpush1.msra.mxu0 %v2208
    %2346 = vmatprep.subr.mxu0 0.0
    %2347 = vmatpush1.msra.mxu0 %v2209
    %2348 = vmatprep.subr.mxu0 0.0
    %2349 = vmatpush1.msra.mxu0 %v2210
    %2350 = vmatprep.subr.mxu0 0.0
    %2351 = vmatpush1.msra.mxu0 %v2211
    %2352 = vmatprep.subr.mxu0 0.0
    %2353 = vmatpush1.msra.mxu0 %v2212
    %2354 = vmatprep.subr.mxu0 0.0
    %2355 = vmatpush1.msra.mxu0 %v2213
    %2356 = vmatprep.subr.mxu0 0.0
    %2357 = vmatpush1.msra.mxu0 %v2214
    %2358 = vmatprep.subr.mxu0 0.0
    %2359 = vmatpush1.msra.mxu0 %v2215
    %2360 = vmatprep.subr.mxu0 0.0
    %2361 = vmatpush1.msra.mxu0 0.0
    %2362 = vmatprep.subr.mxu0 0.0
    %2363 = vmatpush1.msra.mxu0 0.0
    %2364 = vmatprep.subr.mxu0 0.0
    %2365 = vmatpush1.msra.mxu0 0.0
    %2366 = vmatprep.subr.mxu0 0.0
    %2367 = vmatpush1.msra.mxu0 0.0
    %2368 = vmatprep.subr.mxu0 0.0
    %2369 = vmatpush1.msra.mxu0 0.0
    %2370 = vmatprep.subr.mxu0 0.0
    %2371 = vmatpush1.msra.mxu0 0.0
    %2372 = vmatprep.subr.mxu0 0.0
    %2373 = vmatpush1.msra.mxu0 0.0
    %2374 = vmatprep.subr.mxu0 0.0
    %2375 = vmatpush1.msra.mxu0 0.0
    %2376 = vmatprep.subr.mxu0 0.0
    %2377 = vmatpush1.msra.mxu0 0.0
    %2378 = vmatprep.subr.mxu0 0.0
    %2379 = vmatpush1.msra.mxu0 0.0
    %2380 = vmatprep.subr.mxu0 0.0
    %2381 = vmatpush1.msra.mxu0 0.0
    %2382 = vmatprep.subr.mxu0 0.0
    %2383 = vmatpush1.msra.mxu0 0.0
    %2384 = vmatprep.subr.mxu0 0.0
    %2385 = vmatpush1.msra.mxu0 0.0
    %2386 = vmatprep.subr.mxu0 0.0
    %2387 = vmatpush1.msra.mxu0 0.0
    %2388 = vmatprep.subr.mxu0 0.0
    %2389 = vmatpush1.msra.mxu0 0.0
    %2390 = vmatprep.subr.mxu0 0.0
    %2391 = vmatpush1.msra.mxu0 0.0
    %2392 = vmatprep.mubr.f32.mxu0 0.0
    %2393 = vmatmul.mubr.f32.gmra.mrb[0].mxu0 %v2216
    %v2394 = vpop.f32.mrb[0].mxu0
    %v2395 = vadd.f32 %v2251, %v2394
    %v2396 = vpop.f32.mrb[0].mxu0
    %2397 = vmatprep.mubr.f32.mxu0 0.0
    %2398 = vmatmul.mubr.f32.gmra.mrb[0].mxu0 %v2217
    %v2399 = vpop.f32.mrb[0].mxu0
    %v2400 = vadd.f32 %v2256, %v2399
    %v2401 = vpop.f32.mrb[0].mxu0
    %2402 = vmatprep.mubr.f32.mxu0 0.0
    %2403 = vmatmul.mubr.f32.gmra.mrb[0].mxu0 %v2218
    %v2404 = vpop.f32.mrb[0].mxu0
    %v2405 = vadd.f32 %v2261, %v2404
    %v2406 = vpop.f32.mrb[0].mxu0
    %2407 = vmatprep.mubr.f32.mxu0 0.0
    %2408 = vmatmul.mubr.f32.gmra.mrb[0].mxu0 %v2219
    %v2409 = vpop.f32.mrb[0].mxu0
    %v2410 = vadd.f32 %v2266, %v2409
    %v2411 = vpop.f32.mrb[0].mxu0
    %2412 = vmatprep.mubr.f32.mxu0 0.0
    %2413 = vmatmul.mubr.f32.gmra.mrb[0].mxu0 %v2220
    %v2414 = vpop.f32.mrb[0].mxu0
    %v2415 = vadd.f32 %v2271, %v2414
    %v2416 = vpop.f32.mrb[0].mxu0
    %2417 = vmatprep.mubr.f32.mxu0 0.0
    %2418 = vmatmul.mubr.f32.gmra.mrb[0].mxu0 %v2221
    %v2419 = vpop.f32.mrb[0].mxu0
    %v2420 = vadd.f32 %v2276, %v2419
    %v2421 = vpop.f32.mrb[0].mxu0
    %2422 = vmatprep.mubr.f32.mxu0 0.0
    %2423 = vmatmul.mubr.f32.gmra.mrb[0].mxu0 %v2222
    %v2424 = vpop.f32.mrb[0].mxu0
    %v2425 = vadd.f32 %v2281, %v2424
    %v2426 = vpop.f32.mrb[0].mxu0
    %2427 = vmatprep.mubr.f32.mxu0 0.0
    %2428 = vmatmul.mubr.f32.gmra.mrb[0].mxu0 %v2223
    %v2429 = vpop.f32.mrb[0].mxu0
    %v2430 = vadd.f32 %v2286, %v2429
    %v2431 = vpop.f32.mrb[0].mxu0
    %2432 = vmatprep.mubr.f32.mxu0 0.0
    %2433 = vmatmul.mubr.f32.gmra.mrb[0].mxu0 %v2224
    %v2434 = vpop.f32.mrb[0].mxu0
    %v2435 = vadd.f32 %v2291, %v2434
    %v2436 = vpop.f32.mrb[0].mxu0
    %2437 = vmatprep.mubr.f32.mxu0 0.0
    %2438 = vmatmul.mubr.f32.gmra.mrb[0].mxu0 %v2225
    %v2439 = vpop.f32.mrb[0].mxu0
    %v2440 = vadd.f32 %v2296, %v2439
    %v2441 = vpop.f32.mrb[0].mxu0
    %2442 = vmatprep.mubr.f32.mxu0 0.0
    %2443 = vmatmul.mubr.f32.gmra.mrb[0].mxu0 %v2226
    %v2444 = vpop.f32.mrb[0].mxu0
    %v2445 = vadd.f32 %v2301, %v2444
    %v2446 = vpop.f32.mrb[0].mxu0
    %2447 = vmatprep.mubr.f32.mxu0 0.0
    %2448 = vmatmul.mubr.f32.gmra.mrb[0].mxu0 %v2227
    %v2449 = vpop.f32.mrb[0].mxu0
    %v2450 = vadd.f32 %v2306, %v2449
    %v2451 = vpop.f32.mrb[0].mxu0
    %2452 = vmatprep.mubr.f32.mxu0 0.0
    %2453 = vmatmul.mubr.f32.gmra.mrb[0].mxu0 %v2228
    %v2454 = vpop.f32.mrb[0].mxu0
    %v2455 = vadd.f32 %v2311, %v2454
    %v2456 = vpop.f32.mrb[0].mxu0
    %2457 = vmatprep.mubr.f32.mxu0 0.0
    %2458 = vmatmul.mubr.f32.gmra.mrb[0].mxu0 %v2229
    %v2459 = vpop.f32.mrb[0].mxu0
    %v2460 = vadd.f32 %v2316, %v2459
    %v2461 = vpop.f32.mrb[0].mxu0
    %2462 = vmatprep.mubr.f32.mxu0 0.0
    %2463 = vmatmul.mubr.f32.gmra.mrb[0].mxu0 %v2230
    %v2464 = vpop.f32.mrb[0].mxu0
    %v2465 = vadd.f32 %v2321, %v2464
    %v2466 = vpop.f32.mrb[0].mxu0
    %2467 = vmatprep.mubr.f32.mxu0 0.0
    %2468 = vmatmul.mubr.f32.gmra.mrb[0].mxu0 %v2231
    %v2469 = vpop.f32.mrb[0].mxu0
    %v2470 = vadd.f32 %v2326, %v2469
    %v2471 = vpop.f32.mrb[0].mxu0
    %2472 = vdwg.mxu0
    %v2473 = vtanh.pop %v2395
    %v2474 = vtanh.pop %v2400
    %v2475 = vtanh.pop %v2405
    %v2476 = vtanh.pop %v2410
    %v2477 = vtanh.pop %v2415
    %v2478 = vtanh.pop %v2420
    %v2479 = vtanh.pop %v2425
    %v2480 = vtanh.pop %v2430
    %v2481 = vtanh.pop %v2435
    %v2482 = vtanh.pop %v2440
    %v2483 = vtanh.pop %v2445
    %v2484 = vtanh.pop %v2450
    %v2485 = vtanh.pop %v2455
    %v2486 = vtanh.pop %v2460
    %v2487 = vtanh.pop %v2465
    %v2488 = vtanh.pop %v2470
    %v2489 = vld [vmem:[%s12] sm:$0xff]
    %v2490 = vld [vmem:[%s12 + $0x8] sm:$0xff]
    %v2491 = vld [vmem:[%s12 + $0x10] sm:$0xff]
    %v2492 = vld [vmem:[%s12 + $0x18] sm:$0xff]
    %v2493 = vld [vmem:[%s12 + $0x20] sm:$0xff]
    %v2494 = vld [vmem:[%s12 + $0x28] sm:$0xff]
    %v2495 = vld [vmem:[%s12 + $0x30] sm:$0xff]
    %v2496 = vld [vmem:[%s12 + $0x38] sm:$0xff]
    %v2497 = vld [vmem:[%s12 + $0x40] sm:$0xff]
    %v2498 = vld [vmem:[%s12 + $0x48] sm:$0xff]
    %v2499 = vld [vmem:[%s12 + $0x50] sm:$0xff]
    %v2500 = vld [vmem:[%s12 + $0x58] sm:$0xff]
    %v2501 = vld [vmem:[%s12 + $0x60] sm:$0xff]
    %v2502 = vld [vmem:[%s12 + $0x68] sm:$0xff]
    %v2503 = vld [vmem:[%s12 + $0x70] sm:$0xff]
    %v2504 = vld [vmem:[%s12 + $0x78] sm:$0xff]
    %v2505 = vld [vmem:[%s13] sm:$0xff]
    %v2506 = vld [vmem:[%s13 + $0x8] sm:$0xff]
    %v2507 = vld [vmem:[%s13 + $0x10] sm:$0xff]
    %v2508 = vld [vmem:[%s13 + $0x18] sm:$0xff]
    %v2509 = vld [vmem:[%s13 + $0x20] sm:$0xff]
    %v2510 = vld [vmem:[%s13 + $0x28] sm:$0xff]
    %v2511 = vld [vmem:[%s13 + $0x30] sm:$0xff]
    %v2512 = vld [vmem:[%s13 + $0x38] sm:$0xff]
    %v2513 = vld [vmem:[%s13 + $0x40] sm:$0xff]
    %v2514 = vld [vmem:[%s13 + $0x48] sm:$0xff]
    %v2515 = vld [vmem:[%s13 + $0x50] sm:$0xff]
    %v2516 = vld [vmem:[%s13 + $0x58] sm:$0xff]
    %v2517 = vld [vmem:[%s13 + $0x60] sm:$0xff]
    %v2518 = vld [vmem:[%s13 + $0x68] sm:$0xff]
    %v2519 = vld [vmem:[%s13 + $0x70] sm:$0xff]
    %v2520 = vld [vmem:[%s13 + $0x78] sm:$0xff]
    %2522 = vset.pattern.permute.xlu0 0
    %2523 = vperm.xlu0 %2522, %v2505
    %v2524 = vpop.permute.xlu0 %2523
    %2527 = vset.pattern.permute.xlu0 0
    %2528 = vperm.xlu0 %2527, %v2506
    %v2529 = vpop.permute.xlu0 %2528
    %2532 = vset.pattern.permute.xlu0 0
    %2533 = vperm.xlu0 %2532, %v2507
    %v2534 = vpop.permute.xlu0 %2533
    %2537 = vset.pattern.permute.xlu0 0
    %2538 = vperm.xlu0 %2537, %v2508
    %v2539 = vpop.permute.xlu0 %2538
    %2542 = vset.pattern.permute.xlu0 0
    %2543 = vperm.xlu0 %2542, %v2509
    %v2544 = vpop.permute.xlu0 %2543
    %2547 = vset.pattern.permute.xlu0 0
    %2548 = vperm.xlu0 %2547, %v2510
    %v2549 = vpop.permute.xlu0 %2548
    %2552 = vset.pattern.permute.xlu0 0
    %2553 = vperm.xlu0 %2552, %v2511
    %v2554 = vpop.permute.xlu0 %2553
    %2557 = vset.pattern.permute.xlu0 0
    %2558 = vperm.xlu0 %2557, %v2512
    %v2559 = vpop.permute.xlu0 %2558
    %2562 = vset.pattern.permute.xlu0 0
    %2563 = vperm.xlu0 %2562, %v2513
    %v2564 = vpop.permute.xlu0 %2563
    %2567 = vset.pattern.permute.xlu0 0
    %2568 = vperm.xlu0 %2567, %v2514
    %v2569 = vpop.permute.xlu0 %2568
    %2572 = vset.pattern.permute.xlu0 0
    %2573 = vperm.xlu0 %2572, %v2515
    %v2574 = vpop.permute.xlu0 %2573
    %2577 = vset.pattern.permute.xlu0 0
    %2578 = vperm.xlu0 %2577, %v2516
    %v2579 = vpop.permute.xlu0 %2578
    %2582 = vset.pattern.permute.xlu0 0
    %2583 = vperm.xlu0 %2582, %v2517
    %v2584 = vpop.permute.xlu0 %2583
    %2587 = vset.pattern.permute.xlu0 0
    %2588 = vperm.xlu0 %2587, %v2518
    %v2589 = vpop.permute.xlu0 %2588
    %2592 = vset.pattern.permute.xlu0 0
    %2593 = vperm.xlu0 %2592, %v2519
    %v2594 = vpop.permute.xlu0 %2593
    %2597 = vset.pattern.permute.xlu0 0
    %2598 = vperm.xlu0 %2597, %v2520
    %v2599 = vpop.permute.xlu0 %2598
    %2601 = vmatprep.subr.mxu0 0.0
    %2602 = vmatpush1.msra.mxu0 %v2473
    %2603 = vmatprep.subr.mxu0 0.0
    %2604 = vmatpush1.msra.mxu0 %v2474
    %2605 = vmatprep.subr.mxu0 0.0
    %2606 = vmatpush1.msra.mxu0 %v2475
    %2607 = vmatprep.subr.mxu0 0.0
    %2608 = vmatpush1.msra.mxu0 %v2476
    %2609 = vmatprep.subr.mxu0 0.0
    %2610 = vmatpush1.msra.mxu0 %v2477
    %2611 = vmatprep.subr.mxu0 0.0
    %2612 = vmatpush1.msra.mxu0 %v2478
    %2613 = vmatprep.subr.mxu0 0.0
    %2614 = vmatpush1.msra.mxu0 %v2479
    %2615 = vmatprep.subr.mxu0 0.0
    %2616 = vmatpush1.msra.mxu0 %v2480
    %2617 = vmatprep.subr.mxu0 0.0
    %2618 = vmatpush1.msra.mxu0 %v2481
    %2619 = vmatprep.subr.mxu0 0.0
    %2620 = vmatpush1.msra.mxu0 %v2482
    %2621 = vmatprep.subr.mxu0 0.0
    %2622 = vmatpush1.msra.mxu0 %v2483
    %2623 = vmatprep.subr.mxu0 0.0
    %2624 = vmatpush1.msra.mxu0 %v2484
    %2625 = vmatprep.subr.mxu0 0.0
    %2626 = vmatpush1.msra.mxu0 %v2485
    %2627 = vmatprep.subr.mxu0 0.0
    %2628 = vmatpush1.msra.mxu0 %v2486
    %2629 = vmatprep.subr.mxu0 0.0
    %2630 = vmatpush1.msra.mxu0 %v2487
    %2631 = vmatprep.subr.mxu0 0.0
    %2632 = vmatpush1.msra.mxu0 %v2488
    %2633 = vmatprep.subr.mxu0 0.0
    %2634 = vmatpush1.msra.mxu0 0.0
    %2635 = vmatprep.subr.mxu0 0.0
    %2636 = vmatpush1.msra.mxu0 0.0
    %2637 = vmatprep.subr.mxu0 0.0
    %2638 = vmatpush1.msra.mxu0 0.0
    %2639 = vmatprep.subr.mxu0 0.0
    %2640 = vmatpush1.msra.mxu0 0.0
    %2641 = vmatprep.subr.mxu0 0.0
    %2642 = vmatpush1.msra.mxu0 0.0
    %2643 = vmatprep.subr.mxu0 0.0
    %2644 = vmatpush1.msra.mxu0 0.0
    %2645 = vmatprep.subr.mxu0 0.0
    %2646 = vmatpush1.msra.mxu0 0.0
    %2647 = vmatprep.subr.mxu0 0.0
    %2648 = vmatpush1.msra.mxu0 0.0
    %2649 = vmatprep.subr.mxu0 0.0
    %2650 = vmatpush1.msra.mxu0 0.0
    %2651 = vmatprep.subr.mxu0 0.0
    %2652 = vmatpush1.msra.mxu0 0.0
    %2653 = vmatprep.subr.mxu0 0.0
    %2654 = vmatpush1.msra.mxu0 0.0
    %2655 = vmatprep.subr.mxu0 0.0
    %2656 = vmatpush1.msra.mxu0 0.0
    %2657 = vmatprep.subr.mxu0 0.0
    %2658 = vmatpush1.msra.mxu0 0.0
    %2659 = vmatprep.subr.mxu0 0.0
    %2660 = vmatpush1.msra.mxu0 0.0
    %2661 = vmatprep.subr.mxu0 0.0
    %2662 = vmatpush1.msra.mxu0 0.0
    %2663 = vmatprep.subr.mxu0 0.0
    %2664 = vmatpush1.msra.mxu0 0.0
    %2665 = vmatprep.mubr.f32.mxu0 0.0
    %2666 = vmatmul.mubr.f32.gmra.mrb[0].mxu0 %v2489
    %v2667 = vpop.f32.mrb[0].mxu0
    %v2668 = vadd.f32 %v2524, %v2667
    %v2669 = vpop.f32.mrb[0].mxu0
    %2670 = vmatprep.mubr.f32.mxu0 0.0
    %2671 = vmatmul.mubr.f32.gmra.mrb[0].mxu0 %v2490
    %v2672 = vpop.f32.mrb[0].mxu0
    %v2673 = vadd.f32 %v2529, %v2672
    %v2674 = vpop.f32.mrb[0].mxu0
    %2675 = vmatprep.mubr.f32.mxu0 0.0
    %2676 = vmatmul.mubr.f32.gmra.mrb[0].mxu0 %v2491
    %v2677 = vpop.f32.mrb[0].mxu0
    %v2678 = vadd.f32 %v2534, %v2677
    %v2679 = vpop.f32.mrb[0].mxu0
    %2680 = vmatprep.mubr.f32.mxu0 0.0
    %2681 = vmatmul.mubr.f32.gmra.mrb[0].mxu0 %v2492
    %v2682 = vpop.f32.mrb[0].mxu0
    %v2683 = vadd.f32 %v2539, %v2682
    %v2684 = vpop.f32.mrb[0].mxu0
    %2685 = vmatprep.mubr.f32.mxu0 0.0
    %2686 = vmatmul.mubr.f32.gmra.mrb[0].mxu0 %v2493
    %v2687 = vpop.f32.mrb[0].mxu0
    %v2688 = vadd.f32 %v2544, %v2687
    %v2689 = vpop.f32.mrb[0].mxu0
    %2690 = vmatprep.mubr.f32.mxu0 0.0
    %2691 = vmatmul.mubr.f32.gmra.mrb[0].mxu0 %v2494
    %v2692 = vpop.f32.mrb[0].mxu0
    %v2693 = vadd.f32 %v2549, %v2692
    %v2694 = vpop.f32.mrb[0].mxu0
    %2695 = vmatprep.mubr.f32.mxu0 0.0
    %2696 = vmatmul.mubr.f32.gmra.mrb[0].mxu0 %v2495
    %v2697 = vpop.f32.mrb[0].mxu0
    %v2698 = vadd.f32 %v2554, %v2697
    %v2699 = vpop.f32.mrb[0].mxu0
    %2700 = vmatprep.mubr.f32.mxu0 0.0
    %2701 = vmatmul.mubr.f32.gmra.mrb[0].mxu0 %v2496
    %v2702 = vpop.f32.mrb[0].mxu0
    %v2703 = vadd.f32 %v2559, %v2702
    %v2704 = vpop.f32.mrb[0].mxu0
    %2705 = vmatprep.mubr.f32.mxu0 0.0
    %2706 = vmatmul.mubr.f32.gmra.mrb[0].mxu0 %v2497
    %v2707 = vpop.f32.mrb[0].mxu0
    %v2708 = vadd.f32 %v2564, %v2707
    %v2709 = vpop.f32.mrb[0].mxu0
    %2710 = vmatprep.mubr.f32.mxu0 0.0
    %2711 = vmatmul.mubr.f32.gmra.mrb[0].mxu0 %v2498
    %v2712 = vpop.f32.mrb[0].mxu0
    %v2713 = vadd.f32 %v2569, %v2712
    %v2714 = vpop.f32.mrb[0].mxu0
    %2715 = vmatprep.mubr.f32.mxu0 0.0
    %2716 = vmatmul.mubr.f32.gmra.mrb[0].mxu0 %v2499
    %v2717 = vpop.f32.mrb[0].mxu0
    %v2718 = vadd.f32 %v2574, %v2717
    %v2719 = vpop.f32.mrb[0].mxu0
    %2720 = vmatprep.mubr.f32.mxu0 0.0
    %2721 = vmatmul.mubr.f32.gmra.mrb[0].mxu0 %v2500
    %v2722 = vpop.f32.mrb[0].mxu0
    %v2723 = vadd.f32 %v2579, %v2722
    %v2724 = vpop.f32.mrb[0].mxu0
    %2725 = vmatprep.mubr.f32.mxu0 0.0
    %2726 = vmatmul.mubr.f32.gmra.mrb[0].mxu0 %v2501
    %v2727 = vpop.f32.mrb[0].mxu0
    %v2728 = vadd.f32 %v2584, %v2727
    %v2729 = vpop.f32.mrb[0].mxu0
    %2730 = vmatprep.mubr.f32.mxu0 0.0
    %2731 = vmatmul.mubr.f32.gmra.mrb[0].mxu0 %v2502
    %v2732 = vpop.f32.mrb[0].mxu0
    %v2733 = vadd.f32 %v2589, %v2732
    %v2734 = vpop.f32.mrb[0].mxu0
    %2735 = vmatprep.mubr.f32.mxu0 0.0
    %2736 = vmatmul.mubr.f32.gmra.mrb[0].mxu0 %v2503
    %v2737 = vpop.f32.mrb[0].mxu0
    %v2738 = vadd.f32 %v2594, %v2737
    %v2739 = vpop.f32.mrb[0].mxu0
    %2740 = vmatprep.mubr.f32.mxu0 0.0
    %2741 = vmatmul.mubr.f32.gmra.mrb[0].mxu0 %v2504
    %v2742 = vpop.f32.mrb[0].mxu0
    %v2743 = vadd.f32 %v2599, %v2742
    %v2744 = vpop.f32.mrb[0].mxu0
    %2745 = vdwg.mxu0
    %v2746 = vtanh.pop %v2668
    %v2747 = vtanh.pop %v2673
    %v2748 = vtanh.pop %v2678
    %v2749 = vtanh.pop %v2683
    %v2750 = vtanh.pop %v2688
    %v2751 = vtanh.pop %v2693
    %v2752 = vtanh.pop %v2698
    %v2753 = vtanh.pop %v2703
    %v2754 = vtanh.pop %v2708
    %v2755 = vtanh.pop %v2713
    %v2756 = vtanh.pop %v2718
    %v2757 = vtanh.pop %v2723
    %v2758 = vtanh.pop %v2728
    %v2759 = vtanh.pop %v2733
    %v2760 = vtanh.pop %v2738
    %v2761 = vtanh.pop %v2743
    %v2762 = vld [vmem:[%s14] sm:$0x3]
    %v2763 = vld [vmem:[%s15] sm:$0x3]
    %2765 = vset.pattern.permute.xlu0 0
    %2766 = vperm.xlu0 %2765, %v2763
    %v2767 = vpop.permute.xlu0 %2766
    %2769 = vmatprep.subr.mxu0 0.0
    %2770 = vmatpush1.msra.mxu0 %v2746
    %2771 = vmatprep.subr.mxu0 0.0
    %2772 = vmatpush1.msra.mxu0 %v2747
    %2773 = vmatprep.subr.mxu0 0.0
    %2774 = vmatpush1.msra.mxu0 %v2748
    %2775 = vmatprep.subr.mxu0 0.0
    %2776 = vmatpush1.msra.mxu0 %v2749
    %2777 = vmatprep.subr.mxu0 0.0
    %2778 = vmatpush1.msra.mxu0 %v2750
    %2779 = vmatprep.subr.mxu0 0.0
    %2780 = vmatpush1.msra.mxu0 %v2751
    %2781 = vmatprep.subr.mxu0 0.0
    %2782 = vmatpush1.msra.mxu0 %v2752
    %2783 = vmatprep.subr.mxu0 0.0
    %2784 = vmatpush1.msra.mxu0 %v2753
    %2785 = vmatprep.subr.mxu0 0.0
    %2786 = vmatpush1.msra.mxu0 %v2754
    %2787 = vmatprep.subr.mxu0 0.0
    %2788 = vmatpush1.msra.mxu0 %v2755
    %2789 = vmatprep.subr.mxu0 0.0
    %2790 = vmatpush1.msra.mxu0 %v2756
    %2791 = vmatprep.subr.mxu0 0.0
    %2792 = vmatpush1.msra.mxu0 %v2757
    %2793 = vmatprep.subr.mxu0 0.0
    %2794 = vmatpush1.msra.mxu0 %v2758
    %2795 = vmatprep.subr.mxu0 0.0
    %2796 = vmatpush1.msra.mxu0 %v2759
    %2797 = vmatprep.subr.mxu0 0.0
    %2798 = vmatpush1.msra.mxu0 %v2760
    %2799 = vmatprep.subr.mxu0 0.0
    %2800 = vmatpush1.msra.mxu0 %v2761
    %2801 = vmatprep.subr.mxu0 0.0
    %2802 = vmatpush1.msra.mxu0 0.0
    %2803 = vmatprep.subr.mxu0 0.0
    %2804 = vmatpush1.msra.mxu0 0.0
    %2805 = vmatprep.subr.mxu0 0.0
    %2806 = vmatpush1.msra.mxu0 0.0
    %2807 = vmatprep.subr.mxu0 0.0
    %2808 = vmatpush1.msra.mxu0 0.0
    %2809 = vmatprep.subr.mxu0 0.0
    %2810 = vmatpush1.msra.mxu0 0.0
    %2811 = vmatprep.subr.mxu0 0.0
    %2812 = vmatpush1.msra.mxu0 0.0
    %2813 = vmatprep.subr.mxu0 0.0
    %2814 = vmatpush1.msra.mxu0 0.0
    %2815 = vmatprep.subr.mxu0 0.0
    %2816 = vmatpush1.msra.mxu0 0.0
    %2817 = vmatprep.subr.mxu0 0.0
    %2818 = vmatpush1.msra.mxu0 0.0
    %2819 = vmatprep.subr.mxu0 0.0
    %2820 = vmatpush1.msra.mxu0 0.0
    %2821 = vmatprep.subr.mxu0 0.0
    %2822 = vmatpush1.msra.mxu0 0.0
    %2823 = vmatprep.subr.mxu0 0.0
    %2824 = vmatpush1.msra.mxu0 0.0
    %2825 = vmatprep.subr.mxu0 0.0
    %2826 = vmatpush1.msra.mxu0 0.0
    %2827 = vmatprep.subr.mxu0 0.0
    %2828 = vmatpush1.msra.mxu0 0.0
    %2829 = vmatprep.subr.mxu0 0.0
    %2830 = vmatpush1.msra.mxu0 0.0
    %2831 = vmatprep.subr.mxu0 0.0
    %2832 = vmatpush1.msra.mxu0 0.0
    %2833 = vmatprep.mubr.f32.mxu0 0.0
    %2834 = vmatmul.mubr.f32.gmra.mrb[0].mxu0 %v2762
    %v2835 = vpop.f32.mrb[0].mxu0
    %v2836 = vadd.f32 %v2767, %v2835
    %v2837 = vpop.f32.mrb[0].mxu0
    %2838 = vdwg.mxu0
    %v2839 = vmul.f32 %v54, %v2836
    %v2840 = vadd.f32 %v54, %v2839
    %2841 = vst [vmem:[#allocation2] sm:$0x3] %v2840
    // Predicated region
    $region66: #{tpu_custom_call.1} parent=1 // pred_check
      _
    $region67: #{tpu_custom_call.1} parent=1 // pred_check_branch
      %2843 = sbr.rel (0) target = $region69
    $region68: #{tpu_custom_call.1} parent=1 // pred_region
      %s2845 = ssub.s32 32, 32
      %2846 = vsyncadd [#allocation3], %s2845
      %s2848 = sshll.u32 [#allocation2], 4
      %s2849 = int_to_ptr.vmem [resolvable:$true] %s2848
      %2851 = dma.vmem_to_hbm [thread:$0]  %s2849, 32, %s16, [#allocation3]
    $region69: #{tpu_custom_call.1} parent=1 // pred_fallthru
      _
    // Predicated region
    $region70: #{tpu_custom_call.1} parent=1 // pred_check
      _
    $region71: #{tpu_custom_call.1} parent=1 // pred_check_branch
      %2853 = sbr.rel (0) target = $region73
    $region72: #{tpu_custom_call.1} parent=1 // pred_region
      %2854 = dma.done [#allocation3], 32
    $region73: #{tpu_custom_call.1} parent=1 // pred_fallthru
      _
    %2855 = vsyncpa [#allocation3], 1

</llo_original>
